<compile_context>
chip_gen: v7x
topology: tpu7x:2x2x1
jax: 0.10.0
libtpu: 0.0.40
codegen_flags: <defaults>
</compile_context>

<pallas_src>
import functools

import numpy as np

import jax
import jax.numpy as jnp
from jax import lax
from jax.experimental import pallas as pl
from jax.experimental.pallas import tpu as pltpu


# ---------------------------------------------------------------------------
# Fused kernel: whole TCNN forward for one image.
# ---------------------------------------------------------------------------
def _fused_tcnn_kernel(x_ref, p_ref, a_ref, b_ref, o_ref, *, meta, compute_dtype):
    """Whole-network forward for one image.

    x_ref : (1, H0, C0*W0)        input slab, f32
    p_ref : (sum_i 3*Ho_i, maxH)  f32, pre-shifted 0/1 row-gather matrices P_ky
    a_ref : (sum_i 3*CW_i, Npad)  compute_dtype, folded col-upsample/pad + conv weights
    b_ref : (8*L, Npad)           f32, bias row of layer i at row 8*i (lane zero-padded)
    o_ref : (1, H_L, Npad)        f32, lane-padded output slab
    meta  : static per-layer tuple (H, CW, Ho, p_off, a_off, b_off)
    """
    x = x_ref[0]                                          # (H0, C0*W0), f32
    for (h, cw, ho, p_off, a_off, b_off) in meta:
        # One ReLU covers all of this layer's pre-conv ReLUs (and the previous
        # layer's post-conv ReLU): ReLU commutes with the pure-copy upsample/pad
        # and is idempotent.  Lane slice starts at 0 -> no relayout.
        y = jnp.maximum(x[:, :cw], 0.0).astype(compute_dtype)      # (H, CW)
        acc = None
        for ky in range(3):
            # Column upsample/pad + horizontal taps + weights for vertical tap ky.
            a_ky = a_ref[a_off + ky * cw: a_off + (ky + 1) * cw, :]   # (CW, Npad)
            z = jnp.dot(y, a_ky, preferred_element_type=jnp.float32)  # (H, Npad), f32
            # Row upsample + reflection-pad for vertical tap ky (0/1 matrix, f32).
            p_ky = p_ref[p_off + ky * ho: p_off + (ky + 1) * ho, 0:h]  # (Ho, H)
            t = jnp.dot(p_ky, z, preferred_element_type=jnp.float32)   # (Ho, Npad)
            acc = t if acc is None else acc + t
        x = acc + b_ref[b_off:b_off + 1, :]               # bias broadcast, f32
    o_ref[0] = jnp.tanh(x)                                # final_activation = Tanh


# ---------------------------------------------------------------------------
# Host-side operand folding (numpy, runs ONCE per parameter set).
# ---------------------------------------------------------------------------
def _up_pad_index_map(n, s):
    """Source index of nearest-upsample(s) + ReflectionPad2d(1) along one axis."""
    n_up = n * s
    idx = []
    for i in range(n_up + 2):
        u = i - 1
        if u < 0:
            u = 1                      # reflection (does not repeat the edge)
        elif u >= n_up:
            u = n_up - 2
        idx.append(u // s)             # nearest-neighbour source index
    return idx


def prepare_tcnn_operands(params, scale_factors, c0, h0, w0,
                          compute_dtype=jnp.bfloat16):
    """Fold every layer's Upsample + ReflectionPad + Conv into packed matmul operands.

    Returns ((p_pack, a_pack, b_pack), meta, (H_L, C_L, W_L, Npad)).
    """
    # Pre-pass: max input height (P lane width) and common padded output lane width.
    h, w = h0, w0
    max_h, max_n = 0, 0
    for (k, _), s in zip(params, scale_factors):
        c_out = int(k.shape[0])
        s = int(s)
        max_h = max(max_h, h)
        h, w = h * s, w * s
        max_n = max(max_n, c_out * w)
    p_lanes = int(np.ceil(max_h / 8) * 8)
    n_pad = int(np.ceil(max_n / 128) * 128)

    h, w, c_in = h0, w0, c0
    p_blocks, a_blocks, b_rows, meta = [], [], [], []
    p_off = a_off = 0
    for li, ((k, b), s) in enumerate(zip(params, scale_factors)):
        k_np = np.asarray(jax.device_get(k), np.float32)        # (Cout, Cin, 3, 3)
        b_np = np.asarray(jax.device_get(b), np.float32)        # (Cout,)
        c_out = int(k_np.shape[0])
        s = int(s)
        h_out, w_out = h * s, w * s
        cw = c_in * w
        n_real = c_out * w_out

        rmap = _up_pad_index_map(h, s)                          # len h_out + 2
        cmap = _up_pad_index_map(w, s)                          # len w_out + 2

        # P_ky = P[ky:ky+Ho, :]: one-hot row gather, pre-shifted per vertical tap.
        p_full = np.zeros((h_out + 2, h), np.float32)
        p_full[np.arange(h_out + 2), rmap] = 1.0
        p_stack = np.concatenate([p_full[ky:ky + h_out, :] for ky in range(3)], axis=0)
        p_pad = np.zeros((3 * h_out, p_lanes), np.float32)
        p_pad[:, :h] = p_stack
        p_blocks.append(p_pad)

        # sel[kx, w_src, w_dst] = 1 iff horizontal tap kx of output col w_dst reads w_src.
        sel = np.zeros((3, w, w_out), np.float32)
        for kx in range(3):
            for wd in range(w_out):
                sel[kx, cmap[wd + kx], wd] = 1.0
        # A[ky, ci*W + w_src, co*W_out + w_dst] = sum_kx K[co,ci,ky,kx] * sel[kx,...]
        a = np.einsum("oiyx,xvw->yivow", k_np, sel).reshape(3 * cw, n_real)
        a_pad = np.zeros((3 * cw, n_pad), np.float32)
        a_pad[:, :n_real] = a
        a_blocks.append(a_pad)

        b_row = np.zeros((8, n_pad), np.float32)                # 8-row spacing: aligned
        b_row[0, :n_real] = np.repeat(b_np, w_out)
        b_rows.append(b_row)

        meta.append((h, cw, h_out, p_off, a_off, 8 * li))
        p_off += 3 * h_out
        a_off += 3 * cw
        h, w, c_in = h_out, w_out, c_out

    p_pack = jnp.asarray(np.concatenate(p_blocks, axis=0))                      # f32
    a_pack = jnp.asarray(np.concatenate(a_blocks, axis=0), dtype=compute_dtype)
    b_pack = jnp.asarray(np.concatenate(b_rows, axis=0))                        # f32
    return (p_pack, a_pack, b_pack), tuple(meta), (h, c_in, w, n_pad)


# ---------------------------------------------------------------------------
# Forward builder: returns a jitted NCHW->NCHW forward + the packed operands.
# ---------------------------------------------------------------------------
def build_tcnn_forward(params, scale_factors, c0, h0, w0,
                       compute_dtype=jnp.bfloat16):
    ops, meta, (h_l, c_l, w_l, n_pad) = prepare_tcnn_operands(
        params, scale_factors, c0, h0, w0, compute_dtype)
    p_pack, a_pack, b_pack = ops

    kernel = functools.partial(_fused_tcnn_kernel, meta=meta,
                               compute_dtype=compute_dtype)

    flops_per_img = sum(2 * 3 * (h * cw * n_pad + ho * h * n_pad)
                        for (h, cw, ho, _, _, _) in meta)
    weight_bytes = (p_pack.size * p_pack.dtype.itemsize
                    + a_pack.size * a_pack.dtype.itemsize
                    + b_pack.size * b_pack.dtype.itemsize)

    def forward(x_nchw, p_pack, a_pack, b_pack):
        n, c, h, w = x_nchw.shape
        assert (c, h, w) == (c0, h0, w0), "input shape does not match prepared operands"
        # NCHW -> (N, H, C*W): big spatial axis on lanes (tiny tensor, cheap).
        x2d = jnp.transpose(x_nchw.astype(jnp.float32), (0, 2, 1, 3)).reshape(n, h, c * w)

        cost = pl.CostEstimate(
            flops=int(flops_per_img * n),
            transcendentals=int(n * h_l * n_pad),
            bytes_accessed=int(weight_bytes + x2d.size * 4 + n * h_l * n_pad * 4))

        out2d = pl.pallas_call(
            kernel,
            out_shape=jax.ShapeDtypeStruct((n, h_l, n_pad), jnp.float32),
            grid=(n,),
            in_specs=[
                pl.BlockSpec((1, h, c * w), lambda b: (b, 0, 0)),
                # Weight packs: constant block index -> fetched once, reused
                # across grid steps (no re-DMA on later batch iterations).
                pl.BlockSpec(p_pack.shape, lambda b: (0, 0)),
                pl.BlockSpec(a_pack.shape, lambda b: (0, 0)),
                pl.BlockSpec(b_pack.shape, lambda b: (0, 0)),
            ],
            out_specs=pl.BlockSpec((1, h_l, n_pad), lambda b: (b, 0, 0)),
            compiler_params=pltpu.CompilerParams(
                dimension_semantics=("parallel",)),
            cost_estimate=cost,
        )(x2d, p_pack, a_pack, b_pack)

        # Drop lane padding (256 -> Cout*W) and return NCHW (tiny reshape/transpose).
        out = out2d[:, :, :c_l * w_l].reshape(n, h_l, c_l, w_l)
        return jnp.transpose(out, (0, 2, 1, 3))

    return jax.jit(forward), ops


# ---------------------------------------------------------------------------
# Params + pure-JAX reference for validation.
# ---------------------------------------------------------------------------
def init_tcnn_params(key, hidden_dims, c_in, c_out):
    """Deterministic Conv2d params in PyTorch layout: (w: (Cout,Cin,3,3), b: (Cout,))."""
    dims = [c_in] + list(hidden_dims) + [c_out]
    params = []
    for i in range(len(dims) - 1):
        cin, cout = dims[i], dims[i + 1]
        key, kw, kb = jax.random.split(key, 3)
        bound = 1.0 / np.sqrt(cin * 9.0)
        w = jax.random.uniform(kw, (cout, cin, 3, 3), jnp.float32, -bound, bound)
        b = jax.random.uniform(kb, (cout,), jnp.float32, -bound, bound)
        params.append((w, b))
    return params


def tcnn_forward_ref(x_nchw, params, scale_factors):
    """Pure-JAX reference with the exact PyTorch op ordering."""
    x = x_nchw.astype(jnp.float32)
    n_layers = len(params)
    for i, (k, b) in enumerate(params):
        s = int(scale_factors[i])
        x = jnp.repeat(jnp.repeat(x, s, axis=2), s, axis=3)    # Upsample(nearest)
        x = jnp.maximum(x, 0.0)                                # activation
        x = jnp.pad(x, ((0, 0), (0, 0), (1, 1), (1, 1)), mode="reflect")
        x = jnp.maximum(x, 0.0)                                # activation
        x = lax.conv_general_dilated(
            x, k, window_strides=(1, 1), padding="VALID",
            dimension_numbers=("NCHW", "OIHW", "NCHW")) + b[None, :, None, None]
        x = jnp.tanh(x) if i == n_layers - 1 else jnp.maximum(x, 0.0)
    return x


if __name__ == "__main__":
    hidden_dims = [8, 8]
    num_channels_in = 4
    num_channels_out = 3
    scale_factors = [2, 2, 2]

    key = jax.random.PRNGKey(0)
    key, kx = jax.random.split(key)
    x = jax.random.normal(kx, (2, num_channels_in, 8, 8), jnp.float32)  # NCHW

    params = init_tcnn_params(key, hidden_dims, num_channels_in, num_channels_out)
    ref = jax.block_until_ready(tcnn_forward_ref(x, params, scale_factors))

    # f32 path: validates the folded upsample+pad+conv algebra against the reference.
    fwd_f32, ops_f32 = build_tcnn_forward(params, scale_factors, num_channels_in, 8, 8,
                                          compute_dtype=jnp.float32)
    out_f32 = jax.block_until_ready(fwd_f32(x, *ops_f32))
    assert out_f32.shape == (2, num_channels_out, 64, 64), out_f32.shape
    assert jnp.allclose(out_f32, ref, rtol=2e-4, atol=2e-4), "f32 kernel mismatch"

    # bf16-weight path (production default on v5e/v6e/v7x): half the weight DMA bytes
    # and single-pass MXU; accumulation / P matmuls / bias / tanh stay f32.
    fwd_bf16, ops_bf16 = build_tcnn_forward(params, scale_factors, num_channels_in, 8, 8,
                                            compute_dtype=jnp.bfloat16)
    out_bf16 = jax.block_until_ready(fwd_bf16(x, *ops_bf16))
    assert out_bf16.shape == (2, num_channels_out, 64, 64), out_bf16.shape
    assert jnp.allclose(out_bf16, ref, rtol=3e-2, atol=3e-2), "bf16 kernel mismatch"

    print("KERNEL_OK")
</pallas_src>

<mosaic_0001>
module attributes {stable_mosaic.version = 11 : i64} {
  func.func @_fused_tcnn_kernel(%arg0: i32, %arg1: memref<1x8x32xf32, #tpu.memory_space<vmem>>, %arg2: memref<336x32xf32, #tpu.memory_space<vmem>>, %arg3: memref<1248x256xf32, #tpu.memory_space<vmem>>, %arg4: memref<24x256xf32, #tpu.memory_space<vmem>>, %arg5: memref<1x64x256xf32, #tpu.memory_space<vmem>>) attributes {dimension_semantics = [#tpu.dimension_semantics<parallel>], iteration_bounds = array<i64: 2>, scalar_prefetch = 0 : i64, scratch_operands = 0 : i64, tpu.core_type = #tpu.core_type<tc>, window_params = [{transform_indices = @transform_0, window_bounds = array<i64: 1, 8, 32>}, {pipeline_mode = #tpu.pipeline_mode<synchronous>, transform_indices = @transform_1, window_bounds = array<i64: 336, 32>}, {pipeline_mode = #tpu.pipeline_mode<synchronous>, transform_indices = @transform_2, window_bounds = array<i64: 1248, 256>}, {pipeline_mode = #tpu.pipeline_mode<synchronous>, transform_indices = @transform_3, window_bounds = array<i64: 24, 256>}, {transform_indices = @transform_4, window_bounds = array<i64: 1, 64, 256>}]} {
    %c0 = arith.constant 0 : index
    %c0_0 = arith.constant 0 : index
    %c0_1 = arith.constant 0 : index
    %0 = vector.load %arg1[%c0, %c0_0, %c0_1] : memref<1x8x32xf32, #tpu.memory_space<vmem>>, vector<1x8x32xf32>
    %1 = vector.shape_cast %0 : vector<1x8x32xf32> to vector<8x32xf32>
    %cst = arith.constant 0.000000e+00 : f32
    %2 = vector.broadcast %cst : f32 to vector<8x32xf32>
    %3 = arith.maximumf %1, %2 : vector<8x32xf32>
    %c0_2 = arith.constant 0 : index
    %c0_3 = arith.constant 0 : index
    %4 = vector.load %arg3[%c0_2, %c0_3] : memref<1248x256xf32, #tpu.memory_space<vmem>>, vector<32x256xf32>
    %cst_4 = arith.constant dense<0.000000e+00> : vector<8x256xf32>
    %5 = tpu.matmul %3, %4, %cst_4 {dimension_numbers = #tpu.dot_dimension_numbers<[1], [0], [0], [1], [0, 0, 1, 1], [], []>} : vector<8x32xf32>, vector<32x256xf32>, vector<8x256xf32> -> vector<8x256xf32>
    %c0_5 = arith.constant 0 : index
    %c0_6 = arith.constant 0 : index
    %6 = vector.load %arg2[%c0_5, %c0_6] : memref<336x32xf32, #tpu.memory_space<vmem>>, vector<16x8xf32>
    %cst_7 = arith.constant dense<0.000000e+00> : vector<16x256xf32>
    %7 = tpu.matmul %6, %5, %cst_7 {dimension_numbers = #tpu.dot_dimension_numbers<[1], [0], [0], [1], [0, 0, 1, 1], [], []>} : vector<16x8xf32>, vector<8x256xf32>, vector<16x256xf32> -> vector<16x256xf32>
    %c32 = arith.constant 32 : index
    %c0_8 = arith.constant 0 : index
    %8 = vector.load %arg3[%c32, %c0_8] : memref<1248x256xf32, #tpu.memory_space<vmem>>, vector<32x256xf32>
    %cst_9 = arith.constant dense<0.000000e+00> : vector<8x256xf32>
    %9 = tpu.matmul %3, %8, %cst_9 {dimension_numbers = #tpu.dot_dimension_numbers<[1], [0], [0], [1], [0, 0, 1, 1], [], []>} : vector<8x32xf32>, vector<32x256xf32>, vector<8x256xf32> -> vector<8x256xf32>
    %c16 = arith.constant 16 : index
    %c0_10 = arith.constant 0 : index
    %10 = vector.load %arg2[%c16, %c0_10] : memref<336x32xf32, #tpu.memory_space<vmem>>, vector<16x8xf32>
    %cst_11 = arith.constant dense<0.000000e+00> : vector<16x256xf32>
    %11 = tpu.matmul %10, %9, %cst_11 {dimension_numbers = #tpu.dot_dimension_numbers<[1], [0], [0], [1], [0, 0, 1, 1], [], []>} : vector<16x8xf32>, vector<8x256xf32>, vector<16x256xf32> -> vector<16x256xf32>
    %12 = arith.addf %7, %11 : vector<16x256xf32>
    %c64 = arith.constant 64 : index
    %c0_12 = arith.constant 0 : index
    %13 = vector.load %arg3[%c64, %c0_12] : memref<1248x256xf32, #tpu.memory_space<vmem>>, vector<32x256xf32>
    %cst_13 = arith.constant dense<0.000000e+00> : vector<8x256xf32>
    %14 = tpu.matmul %3, %13, %cst_13 {dimension_numbers = #tpu.dot_dimension_numbers<[1], [0], [0], [1], [0, 0, 1, 1], [], []>} : vector<8x32xf32>, vector<32x256xf32>, vector<8x256xf32> -> vector<8x256xf32>
    %c32_14 = arith.constant 32 : index
    %c0_15 = arith.constant 0 : index
    %15 = vector.load %arg2[%c32_14, %c0_15] : memref<336x32xf32, #tpu.memory_space<vmem>>, vector<16x8xf32>
    %cst_16 = arith.constant dense<0.000000e+00> : vector<16x256xf32>
    %16 = tpu.matmul %15, %14, %cst_16 {dimension_numbers = #tpu.dot_dimension_numbers<[1], [0], [0], [1], [0, 0, 1, 1], [], []>} : vector<16x8xf32>, vector<8x256xf32>, vector<16x256xf32> -> vector<16x256xf32>
    %17 = arith.addf %12, %16 : vector<16x256xf32>
    %c0_17 = arith.constant 0 : index
    %c0_18 = arith.constant 0 : index
    %18 = vector.load %arg4[%c0_17, %c0_18] : memref<24x256xf32, #tpu.memory_space<vmem>>, vector<1x256xf32>
    %19 = vector.broadcast %18 : vector<1x256xf32> to vector<16x256xf32>
    %20 = arith.addf %17, %19 : vector<16x256xf32>
    %21 = vector.extract_strided_slice %20 {offsets = [0, 0], sizes = [16, 128], strides = [1, 1]} : vector<16x256xf32> to vector<16x128xf32>
    %cst_19 = arith.constant 0.000000e+00 : f32
    %22 = vector.broadcast %cst_19 : f32 to vector<16x128xf32>
    %23 = arith.maximumf %21, %22 : vector<16x128xf32>
    %c96 = arith.constant 96 : index
    %c0_20 = arith.constant 0 : index
    %24 = vector.load %arg3[%c96, %c0_20] : memref<1248x256xf32, #tpu.memory_space<vmem>>, vector<128x256xf32>
    %cst_21 = arith.constant dense<0.000000e+00> : vector<16x256xf32>
    %25 = tpu.matmul %23, %24, %cst_21 {dimension_numbers = #tpu.dot_dimension_numbers<[1], [0], [0], [1], [0, 0, 1, 1], [], []>} : vector<16x128xf32>, vector<128x256xf32>, vector<16x256xf32> -> vector<16x256xf32>
    %c48 = arith.constant 48 : index
    %c0_22 = arith.constant 0 : index
    %26 = vector.load %arg2[%c48, %c0_22] : memref<336x32xf32, #tpu.memory_space<vmem>>, vector<32x16xf32>
    %cst_23 = arith.constant dense<0.000000e+00> : vector<32x256xf32>
    %27 = tpu.matmul %26, %25, %cst_23 {dimension_numbers = #tpu.dot_dimension_numbers<[1], [0], [0], [1], [0, 0, 1, 1], [], []>} : vector<32x16xf32>, vector<16x256xf32>, vector<32x256xf32> -> vector<32x256xf32>
    %c224 = arith.constant 224 : index
    %c0_24 = arith.constant 0 : index
    %28 = vector.load %arg3[%c224, %c0_24] : memref<1248x256xf32, #tpu.memory_space<vmem>>, vector<128x256xf32>
    %cst_25 = arith.constant dense<0.000000e+00> : vector<16x256xf32>
    %29 = tpu.matmul %23, %28, %cst_25 {dimension_numbers = #tpu.dot_dimension_numbers<[1], [0], [0], [1], [0, 0, 1, 1], [], []>} : vector<16x128xf32>, vector<128x256xf32>, vector<16x256xf32> -> vector<16x256xf32>
    %c80 = arith.constant 80 : index
    %c0_26 = arith.constant 0 : index
    %30 = vector.load %arg2[%c80, %c0_26] : memref<336x32xf32, #tpu.memory_space<vmem>>, vector<32x16xf32>
    %cst_27 = arith.constant dense<0.000000e+00> : vector<32x256xf32>
    %31 = tpu.matmul %30, %29, %cst_27 {dimension_numbers = #tpu.dot_dimension_numbers<[1], [0], [0], [1], [0, 0, 1, 1], [], []>} : vector<32x16xf32>, vector<16x256xf32>, vector<32x256xf32> -> vector<32x256xf32>
    %32 = arith.addf %27, %31 : vector<32x256xf32>
    %c352 = arith.constant 352 : index
    %c0_28 = arith.constant 0 : index
    %33 = vector.load %arg3[%c352, %c0_28] : memref<1248x256xf32, #tpu.memory_space<vmem>>, vector<128x256xf32>
    %cst_29 = arith.constant dense<0.000000e+00> : vector<16x256xf32>
    %34 = tpu.matmul %23, %33, %cst_29 {dimension_numbers = #tpu.dot_dimension_numbers<[1], [0], [0], [1], [0, 0, 1, 1], [], []>} : vector<16x128xf32>, vector<128x256xf32>, vector<16x256xf32> -> vector<16x256xf32>
    %c112 = arith.constant 112 : index
    %c0_30 = arith.constant 0 : index
    %35 = vector.load %arg2[%c112, %c0_30] : memref<336x32xf32, #tpu.memory_space<vmem>>, vector<32x16xf32>
    %cst_31 = arith.constant dense<0.000000e+00> : vector<32x256xf32>
    %36 = tpu.matmul %35, %34, %cst_31 {dimension_numbers = #tpu.dot_dimension_numbers<[1], [0], [0], [1], [0, 0, 1, 1], [], []>} : vector<32x16xf32>, vector<16x256xf32>, vector<32x256xf32> -> vector<32x256xf32>
    %37 = arith.addf %32, %36 : vector<32x256xf32>
    %c8 = arith.constant 8 : index
    %c0_32 = arith.constant 0 : index
    %38 = vector.load %arg4[%c8, %c0_32] : memref<24x256xf32, #tpu.memory_space<vmem>>, vector<1x256xf32>
    %39 = vector.broadcast %38 : vector<1x256xf32> to vector<32x256xf32>
    %40 = arith.addf %37, %39 : vector<32x256xf32>
    %cst_33 = arith.constant 0.000000e+00 : f32
    %41 = vector.broadcast %cst_33 : f32 to vector<32x256xf32>
    %42 = arith.maximumf %40, %41 : vector<32x256xf32>
    %c480 = arith.constant 480 : index
    %c0_34 = arith.constant 0 : index
    %43 = vector.load %arg3[%c480, %c0_34] : memref<1248x256xf32, #tpu.memory_space<vmem>>, vector<256x256xf32>
    %cst_35 = arith.constant dense<0.000000e+00> : vector<32x256xf32>
    %44 = tpu.matmul %42, %43, %cst_35 {dimension_numbers = #tpu.dot_dimension_numbers<[1], [0], [0], [1], [0, 0, 1, 1], [], []>} : vector<32x256xf32>, vector<256x256xf32>, vector<32x256xf32> -> vector<32x256xf32>
    %c144 = arith.constant 144 : index
    %c0_36 = arith.constant 0 : index
    %45 = vector.load %arg2[%c144, %c0_36] : memref<336x32xf32, #tpu.memory_space<vmem>>, vector<64x32xf32>
    %cst_37 = arith.constant dense<0.000000e+00> : vector<64x256xf32>
    %46 = tpu.matmul %45, %44, %cst_37 {dimension_numbers = #tpu.dot_dimension_numbers<[1], [0], [0], [1], [0, 0, 1, 1], [], []>} : vector<64x32xf32>, vector<32x256xf32>, vector<64x256xf32> -> vector<64x256xf32>
    %c736 = arith.constant 736 : index
    %c0_38 = arith.constant 0 : index
    %47 = vector.load %arg3[%c736, %c0_38] : memref<1248x256xf32, #tpu.memory_space<vmem>>, vector<256x256xf32>
    %cst_39 = arith.constant dense<0.000000e+00> : vector<32x256xf32>
    %48 = tpu.matmul %42, %47, %cst_39 {dimension_numbers = #tpu.dot_dimension_numbers<[1], [0], [0], [1], [0, 0, 1, 1], [], []>} : vector<32x256xf32>, vector<256x256xf32>, vector<32x256xf32> -> vector<32x256xf32>
    %c208 = arith.constant 208 : index
    %c0_40 = arith.constant 0 : index
    %49 = vector.load %arg2[%c208, %c0_40] : memref<336x32xf32, #tpu.memory_space<vmem>>, vector<64x32xf32>
    %cst_41 = arith.constant dense<0.000000e+00> : vector<64x256xf32>
    %50 = tpu.matmul %49, %48, %cst_41 {dimension_numbers = #tpu.dot_dimension_numbers<[1], [0], [0], [1], [0, 0, 1, 1], [], []>} : vector<64x32xf32>, vector<32x256xf32>, vector<64x256xf32> -> vector<64x256xf32>
    %51 = arith.addf %46, %50 : vector<64x256xf32>
    %c992 = arith.constant 992 : index
    %c0_42 = arith.constant 0 : index
    %52 = vector.load %arg3[%c992, %c0_42] : memref<1248x256xf32, #tpu.memory_space<vmem>>, vector<256x256xf32>
    %cst_43 = arith.constant dense<0.000000e+00> : vector<32x256xf32>
    %53 = tpu.matmul %42, %52, %cst_43 {dimension_numbers = #tpu.dot_dimension_numbers<[1], [0], [0], [1], [0, 0, 1, 1], [], []>} : vector<32x256xf32>, vector<256x256xf32>, vector<32x256xf32> -> vector<32x256xf32>
    %c272 = arith.constant 272 : index
    %c0_44 = arith.constant 0 : index
    %54 = vector.load %arg2[%c272, %c0_44] : memref<336x32xf32, #tpu.memory_space<vmem>>, vector<64x32xf32>
    %cst_45 = arith.constant dense<0.000000e+00> : vector<64x256xf32>
    %55 = tpu.matmul %54, %53, %cst_45 {dimension_numbers = #tpu.dot_dimension_numbers<[1], [0], [0], [1], [0, 0, 1, 1], [], []>} : vector<64x32xf32>, vector<32x256xf32>, vector<64x256xf32> -> vector<64x256xf32>
    %56 = arith.addf %51, %55 : vector<64x256xf32>
    %c16_46 = arith.constant 16 : index
    %c0_47 = arith.constant 0 : index
    %57 = vector.load %arg4[%c16_46, %c0_47] : memref<24x256xf32, #tpu.memory_space<vmem>>, vector<1x256xf32>
    %58 = vector.broadcast %57 : vector<1x256xf32> to vector<64x256xf32>
    %59 = arith.addf %56, %58 : vector<64x256xf32>
    %60 = math.tanh %59 : vector<64x256xf32>
    %c0_48 = arith.constant 0 : index
    %c0_49 = arith.constant 0 : index
    %c0_50 = arith.constant 0 : index
    %61 = vector.load %arg5[%c0_48, %c0_49, %c0_50] : memref<1x64x256xf32, #tpu.memory_space<vmem>>, vector<1x64x256xf32>
    %62 = vector.shape_cast %61 : vector<1x64x256xf32> to vector<64x256xf32>
    %63 = vector.shape_cast %60 : vector<64x256xf32> to vector<1x64x256xf32>
    tpu.vector_store %arg5[%c0_48, %c0_49, %c0_50], %63 {strides = array<i32>} : memref<1x64x256xf32, #tpu.memory_space<vmem>>, vector<1x64x256xf32>,
    return
  }
  func.func @transform_0(%arg0: i32) -> (i32, i32, i32) {
    %c0_i32 = arith.constant 0 : i32
    %c0_i32_0 = arith.constant 0 : i32
    %c0_i32_1 = arith.constant 0 : i32
    return %arg0, %c0_i32, %c0_i32_0 : i32, i32, i32
  }
  func.func @transform_1(%arg0: i32) -> (i32, i32) {
    %c0_i32 = arith.constant 0 : i32
    %c0_i32_0 = arith.constant 0 : i32
    %c0_i32_1 = arith.constant 0 : i32
    return %c0_i32, %c0_i32_0 : i32, i32
  }
  func.func @transform_2(%arg0: i32) -> (i32, i32) {
    %c0_i32 = arith.constant 0 : i32
    %c0_i32_0 = arith.constant 0 : i32
    %c0_i32_1 = arith.constant 0 : i32
    return %c0_i32, %c0_i32_0 : i32, i32
  }
  func.func @transform_3(%arg0: i32) -> (i32, i32) {
    %c0_i32 = arith.constant 0 : i32
    %c0_i32_0 = arith.constant 0 : i32
    %c0_i32_1 = arith.constant 0 : i32
    return %c0_i32, %c0_i32_0 : i32, i32
  }
  func.func @transform_4(%arg0: i32) -> (i32, i32, i32) {
    %c0_i32 = arith.constant 0 : i32
    %c0_i32_0 = arith.constant 0 : i32
    %c0_i32_1 = arith.constant 0 : i32
    return %arg0, %c0_i32, %c0_i32_0 : i32, i32, i32
  }
}

</mosaic_0001>

<llo_original>
// kernel: forward.1
$region0: #{forward.1}
  #allocation0 [shape = 'u32[]', space=smem, size = 0x4, offset = 0x4, fixed_abs, tag = 'smem constant byte address 0x4 - core index']
  #allocation1 [shape = 'u32[144,128]{1,0:T(1,128)}', space=vmem, size = 0x12000, scoped, tag = 'internal scratch']
  %s0 = inlined_call_operand.vmem [shape: f32[2,8,32], index: 0, kind: input, shape index: {}]
  %s1 = inlined_call_operand.vmem [shape: f32[336,32], index: 1, kind: input, shape index: {}]
  %s2 = inlined_call_operand.hbm [shape: f32[1248,256], index: 2, kind: input, shape index: {}]
  %s3 = inlined_call_operand.hbm [shape: f32[24,256], index: 3, kind: input, shape index: {}]
  %s4 = inlined_call_operand.vmem [shape: f32[2,64,256], index: 4, kind: output, shape index: {}]
  %s5 = sld [smem:[#allocation0]]
  $region57: #{forward.1} parent=0
    _
  %s7 = ssub.s32 1, %s5
  %s8 = scalar_select 0, %s7, %s5
  $region1: #{forward.1} parent=0
    #allocation2 [shape = 'u8[1277952]{0}', space=vmem, size = 0x138000, scoped, tag = 'input window, operand 2, single buffered']
    #allocation3 [shape = 's32[2]{0}', space=sflag, size = 0x8, scoped, tag = 'scoped memory for forward.1']
    #allocation4 [shape = 'u8[24576]{0}', space=vmem, size = 0x6000, scoped, tag = 'input window, operand 3, single buffered']
    #allocation5 [shape = 's32[1]{0}', space=sflag, size = 0x4, scoped, tag = 'scoped memory for forward.1']
    %9 = vsyncpa [#allocation3], 0
    %10 = vsyncpa [#allocation5], 0
    loop: start=0, step=1, limit=4
    $region2: #{forward.1} parent=1 // loop_pre_header
      _
    $region3: #{forward.1} parent=1 // loop_header
      %s12 = sphi 0, %s16
      %p13 = scmp.ge.s32.totalorder %s12, 4
      %s22 = sphi 0, %s24
      %s25 = sphi 0, %s22
      %s26 = sphi 0, %s25
      %s42 = sphi 0, %s26
      %s46 = sphi 0, %s46
      %s48 = sphi 0, %s46
      %s49 = sphi 0, %s48
      %s63 = sphi 0, %s49
      %s67 = sphi 0, %s67
      %s69 = sphi 0, %s67
      %s70 = sphi 0, %s69
      %s84 = sphi 0, %s70
      %s88 = sphi 0, %s88
      %s90 = sphi 0, %s88
      %s91 = sphi 0, %s90
      %s105 = sphi 0, %s91
      %s111 = sphi 0, %s113
      %s114 = sphi 0, %s111
      %s115 = sphi 0, %s114
      %s131 = sphi 0, %s115
    $region4: #{forward.1} parent=1 // loop_header_branch
      %15 = sbr.rel (%p13) target = $region8
    $region5: #{forward.1} parent=1 // loop_body
      %s17 = ssub.s32 %s12, 1
      %s18 = ssub.s32 %s12, 2
      %s19 = sadd.s32 %s12, 1
      %s20 = ssub.s32 %s12, %s19
      %p21 = scmp.eq.s32.totalorder %s20, 0
      %s23 = sadd.s32 %s22, 1
      %s24 = scalar_select %p21, %s22, %s23
      %p27 = pneg %p21
      %p28 = scmp.eq.s32.totalorder %s12, 1
      %p29 = por %p27, %p28
      %p30 = scmp.ne.s32.totalorder %s22, %s25
      %p31 = scmp.eq.s32.totalorder %s12, 0
      %p32 = por %p30, %p31
      %p33 = scmp.ne.s32.totalorder %s22, %s25
      %p34 = scmp.eq.s32.totalorder %s17, 1
      %p35 = por %p33, %p34
      %p36 = scmp.ne.s32.totalorder %s25, %s26
      %p37 = scmp.eq.s32.totalorder %s17, 0
      %p38 = por %p36, %p37
      %p39 = scmp.ne.s32.totalorder %s25, %s26
      %p40 = scmp.eq.s32.totalorder %s18, 1
      %p41 = por %p39, %p40
      %p43 = scmp.ne.s32.totalorder %s26, %s42
      %p44 = scmp.eq.s32.totalorder %s18, 0
      %p45 = por %p43, %p44
      %s47 = sadd.s32 %s46, 1
      %p50 = scmp.eq.s32.totalorder %s12, 1
      %p51 = scmp.ne.s32.totalorder %s46, %s48
      %p52 = scmp.eq.s32.totalorder %s12, 0
      %p53 = por %p51, %p52
      %p54 = scmp.ne.s32.totalorder %s46, %s48
      %p55 = scmp.eq.s32.totalorder %s17, 1
      %p56 = por %p54, %p55
      %p57 = scmp.ne.s32.totalorder %s48, %s49
      %p58 = scmp.eq.s32.totalorder %s17, 0
      %p59 = por %p57, %p58
      %p60 = scmp.ne.s32.totalorder %s48, %s49
      %p61 = scmp.eq.s32.totalorder %s18, 1
      %p62 = por %p60, %p61
      %p64 = scmp.ne.s32.totalorder %s49, %s63
      %p65 = scmp.eq.s32.totalorder %s18, 0
      %p66 = por %p64, %p65
      %s68 = sadd.s32 %s67, 1
      %p71 = scmp.eq.s32.totalorder %s12, 1
      %p72 = scmp.ne.s32.totalorder %s67, %s69
      %p73 = scmp.eq.s32.totalorder %s12, 0
      %p74 = por %p72, %p73
      %p75 = scmp.ne.s32.totalorder %s67, %s69
      %p76 = scmp.eq.s32.totalorder %s17, 1
      %p77 = por %p75, %p76
      %p78 = scmp.ne.s32.totalorder %s69, %s70
      %p79 = scmp.eq.s32.totalorder %s17, 0
      %p80 = por %p78, %p79
      %p81 = scmp.ne.s32.totalorder %s69, %s70
      %p82 = scmp.eq.s32.totalorder %s18, 1
      %p83 = por %p81, %p82
      %p85 = scmp.ne.s32.totalorder %s70, %s84
      %p86 = scmp.eq.s32.totalorder %s18, 0
      %p87 = por %p85, %p86
      %s89 = sadd.s32 %s88, 1
      %p92 = scmp.eq.s32.totalorder %s12, 1
      %p93 = scmp.ne.s32.totalorder %s88, %s90
      %p94 = scmp.eq.s32.totalorder %s12, 0
      %p95 = por %p93, %p94
      %p96 = scmp.ne.s32.totalorder %s88, %s90
      %p97 = scmp.eq.s32.totalorder %s17, 1
      %p98 = por %p96, %p97
      %p99 = scmp.ne.s32.totalorder %s90, %s91
      %p100 = scmp.eq.s32.totalorder %s17, 0
      %p101 = por %p99, %p100
      %p102 = scmp.ne.s32.totalorder %s90, %s91
      %p103 = scmp.eq.s32.totalorder %s18, 1
      %p104 = por %p102, %p103
      %p106 = scmp.ne.s32.totalorder %s91, %s105
      %p107 = scmp.eq.s32.totalorder %s18, 0
      %p108 = por %p106, %p107
      %s109 = ssub.s32 %s12, %s19
      %p110 = scmp.eq.s32.totalorder %s109, 0
      %s112 = sadd.s32 %s111, 1
      %s113 = scalar_select %p110, %s111, %s112
      %p116 = pneg %p110
      %p117 = scmp.eq.s32.totalorder %s12, 1
      %p118 = por %p116, %p117
      %p119 = scmp.ne.s32.totalorder %s111, %s114
      %p120 = scmp.eq.s32.totalorder %s12, 0
      %p121 = por %p119, %p120
      %p122 = scmp.ne.s32.totalorder %s111, %s114
      %p123 = scmp.eq.s32.totalorder %s17, 1
      %p124 = por %p122, %p123
      %p125 = scmp.ne.s32.totalorder %s114, %s115
      %p126 = scmp.eq.s32.totalorder %s17, 0
      %p127 = por %p125, %p126
      %p128 = scmp.ne.s32.totalorder %s114, %s115
      %p129 = scmp.eq.s32.totalorder %s18, 1
      %p130 = por %p128, %p129
      %p132 = scmp.ne.s32.totalorder %s115, %s131
      %p133 = scmp.eq.s32.totalorder %s18, 0
      %p134 = por %p132, %p133
      %p135 = scmp.le.s32.totalorder 1, %s12
      %p136 = scmp.lt.s32.totalorder %s12, 3
      %p137 = pnand %p135, %p136
      %p138 = pneg %p137
      // Predicated region
      $region9: #{forward.1} parent=5 // pred_check
        _
      $region10: #{forward.1} parent=5 // pred_check_branch
        %140 = sbr.rel (%p137) target = $region12
      $region11: #{forward.1} parent=5 // pred_region
        %s141 = ssub.s32 %s12, 1
        // Predicated region
        $region13: #{forward.1} parent=11 // pred_check
          %p142 = pneg %p59
        $region14: #{forward.1} parent=11 // pred_check_branch
          %144 = sbr.rel (%p142) target = $region16
        $region15: #{forward.1} parent=11 // pred_region
          _
        $region16: #{forward.1} parent=11 // pred_fallthru
          _
        // Predicated region
        $region17: #{forward.1} parent=11 // pred_check
          %p145 = pneg %p80
        $region18: #{forward.1} parent=11 // pred_check_branch
          %147 = sbr.rel (%p145) target = $region20
        $region19: #{forward.1} parent=11 // pred_region
          %s149 = ssub.s32 39936, 39936
          %150 = vsyncadd [#allocation3], %s149
          %s151 = sshll.u32 [#allocation2], 4
          %s152 = int_to_ptr.vmem [resolvable:$true] %s151
          %157 = dma.hbm_to_vmem [thread:$0]  %s2, 39936, %s152, [#allocation3], 256, 256, 16
        $region20: #{forward.1} parent=11 // pred_fallthru
          _
        // Predicated region
        $region21: #{forward.1} parent=11 // pred_check
          %p158 = pneg %p101
        $region22: #{forward.1} parent=11 // pred_check_branch
          %160 = sbr.rel (%p158) target = $region24
        $region23: #{forward.1} parent=11 // pred_region
          %s162 = ssub.s32 768, 768
          %163 = vsyncadd [#allocation5], %s162
          %s164 = sshll.u32 [#allocation4], 4
          %s165 = int_to_ptr.vmem [resolvable:$true] %s164
          %170 = dma.hbm_to_vmem [thread:$0]  %s3, 768, %s165, [#allocation5], 256, 256, 16
        $region24: #{forward.1} parent=11 // pred_fallthru
          _
      $region12: #{forward.1} parent=5 // pred_fallthru
        _
      %p171 = scmp.lt.s32.totalorder %s12, 2
      // Predicated region
      $region25: #{forward.1} parent=5 // pred_check
        %p172 = pneg %p171
      $region26: #{forward.1} parent=5 // pred_check_branch
        %174 = sbr.rel (%p172) target = $region28
      $region27: #{forward.1} parent=5 // pred_region
        // Predicated region
        $region29: #{forward.1} parent=27 // pred_check
          %p175 = pneg %p32
        $region30: #{forward.1} parent=27 // pred_check_branch
          %177 = sbr.rel (%p175) target = $region32
        $region31: #{forward.1} parent=27 // pred_region
          %p178 = scmp.lt.s32.totalorder %s12, 1
          %s179 = scalar_select %p178, %s12, 1
          %s180 = smul.addr %s179, 8
          %s181 = scalar_lea.vmem %s0, %s180
        $region32: #{forward.1} parent=27 // pred_fallthru
          _
      $region28: #{forward.1} parent=5 // pred_fallthru
        _
      %p182 = scmp.le.s32.totalorder 1, %s12
      %p183 = scmp.lt.s32.totalorder %s12, 3
      %p184 = pnand %p182, %p183
      %p185 = pneg %p184
      // Predicated region
      $region33: #{forward.1} parent=5 // pred_check
        _
      $region34: #{forward.1} parent=5 // pred_check_branch
        %187 = sbr.rel (%p184) target = $region36
      $region35: #{forward.1} parent=5 // pred_region
        %s188 = ssub.s32 %s12, 1
        // Predicated region
        $region37: #{forward.1} parent=35 // pred_check
          %p189 = pneg %p80
        $region38: #{forward.1} parent=35 // pred_check_branch
          %191 = sbr.rel (%p189) target = $region40
        $region39: #{forward.1} parent=35 // pred_region
          %192 = dma.done [#allocation3], 39936
        $region40: #{forward.1} parent=35 // pred_fallthru
          _
        // Predicated region
        $region41: #{forward.1} parent=35 // pred_check
          %p193 = pneg %p101
        $region42: #{forward.1} parent=35 // pred_check_branch
          %195 = sbr.rel (%p193) target = $region44
        $region43: #{forward.1} parent=35 // pred_region
          %196 = dma.done [#allocation5], 768
        $region44: #{forward.1} parent=35 // pred_fallthru
          _
        %p197 = scmp.lt.s32.totalorder %s17, 1
        %s198 = scalar_select %p197, %s17, 1
        %s199 = smul.addr %s198, 8
        %s200 = scalar_lea.vmem %s0, %s199
        %p201 = pneg %p38
        %p202 = pneg %p35
        %p203 = pneg %p59
        %p204 = pneg %p56
        %p205 = pneg %p80
        %p206 = pneg %p77
        %p207 = pneg %p101
        %p208 = pneg %p98
        %p209 = pneg %p127
        %p210 = pneg %p124
        %p211 = scmp.lt.s32.totalorder %s17, 1
        %s212 = scalar_select %p211, %s17, 1
        %s213 = smul.addr %s212, 16
        %s214 = smul.addr %s213, 8
        %s215 = scalar_lea.vmem %s4, %s214
        %p216 = scmp.lt.s32.totalorder %s17, 1
        %s217 = scalar_select %p216, %s17, 1
        %s218 = smul.addr %s217, 8
        %s219 = scalar_lea.vmem %s0, %s218
        %p220 = scmp.lt.s32.totalorder %s17, 1
        %s221 = scalar_select %p220, %s17, 1
        %s222 = smul.addr %s221, 16
        %s223 = smul.addr %s222, 8
        %s224 = scalar_lea.vmem %s4, %s223
        %v225 = vld [vmem:[%s219] sm:$0xff]
        %v226 = vmax.f32 %v225, 0.0
        %v227 = vld [vmem:[#allocation2] sm:$0xff]
        %v228 = vld [vmem:[#allocation2 + $0x8] sm:$0xff]
        %v229 = vld [vmem:[#allocation2 + $0x10] sm:$0xff]
        %v230 = vld [vmem:[#allocation2 + $0x18] sm:$0xff]
        %v231 = vld [vmem:[#allocation2 + $0x20] sm:$0xff]
        %v232 = vld [vmem:[#allocation2 + $0x28] sm:$0xff]
        %v233 = vld [vmem:[#allocation2 + $0x30] sm:$0xff]
        %v234 = vld [vmem:[#allocation2 + $0x38] sm:$0xff]
        %vm235 = vcmask 261120
        %v237 = vsel %vm235, %v226, 0
        %239 = vmatprep.subr.mxu0 %v228
        %240 = vmatpush1.msra.mxu0 %v227
        %241 = vmatprep.subr.mxu0 %v230
        %242 = vmatpush1.msra.mxu0 %v229
        %243 = vmatprep.subr.mxu0 %v232
        %244 = vmatpush1.msra.mxu0 %v231
        %245 = vmatprep.subr.mxu0 %v234
        %246 = vmatpush1.msra.mxu0 %v233
        %247 = vmatprep.subr.mxu0 0.0
        %248 = vmatpush1.msra.mxu0 0.0
        %249 = vmatprep.subr.mxu0 0.0
        %250 = vmatpush1.msra.mxu0 0.0
        %251 = vmatprep.subr.mxu0 0.0
        %252 = vmatpush1.msra.mxu0 0.0
        %253 = vmatprep.subr.mxu0 0.0
        %254 = vmatpush1.msra.mxu0 0.0
        %255 = vmatprep.subr.mxu0 0.0
        %256 = vmatpush1.msra.mxu0 0.0
        %257 = vmatprep.subr.mxu0 0.0
        %258 = vmatpush1.msra.mxu0 0.0
        %259 = vmatprep.subr.mxu0 0.0
        %260 = vmatpush1.msra.mxu0 0.0
        %261 = vmatprep.subr.mxu0 0.0
        %262 = vmatpush1.msra.mxu0 0.0
        %263 = vmatprep.subr.mxu0 0.0
        %264 = vmatpush1.msra.mxu0 0.0
        %265 = vmatprep.subr.mxu0 0.0
        %266 = vmatpush1.msra.mxu0 0.0
        %267 = vmatprep.subr.mxu0 0.0
        %268 = vmatpush1.msra.mxu0 0.0
        %269 = vmatprep.subr.mxu0 0.0
        %270 = vmatpush1.msra.mxu0 0.0
        %271 = vmatprep.subr.mxu0 0.0
        %272 = vmatpush1.msra.mxu0 0.0
        %273 = vmatprep.subr.mxu0 0.0
        %274 = vmatpush1.msra.mxu0 0.0
        %275 = vmatprep.subr.mxu0 0.0
        %276 = vmatpush1.msra.mxu0 0.0
        %277 = vmatprep.subr.mxu0 0.0
        %278 = vmatpush1.msra.mxu0 0.0
        %279 = vmatprep.subr.mxu0 0.0
        %280 = vmatpush1.msra.mxu0 0.0
        %281 = vmatprep.subr.mxu0 0.0
        %282 = vmatpush1.msra.mxu0 0.0
        %283 = vmatprep.subr.mxu0 0.0
        %284 = vmatpush1.msra.mxu0 0.0
        %285 = vmatprep.subr.mxu0 0.0
        %286 = vmatpush1.msra.mxu0 0.0
        %287 = vmatprep.subr.mxu0 0.0
        %288 = vmatpush1.msra.mxu0 0.0
        %289 = vmatprep.subr.mxu0 0.0
        %290 = vmatpush1.msra.mxu0 0.0
        %291 = vmatprep.subr.mxu0 0.0
        %292 = vmatpush1.msra.mxu0 0.0
        %293 = vmatprep.subr.mxu0 0.0
        %294 = vmatpush1.msra.mxu0 0.0
        %295 = vmatprep.subr.mxu0 0.0
        %296 = vmatpush1.msra.mxu0 0.0
        %297 = vmatprep.subr.mxu0 0.0
        %298 = vmatpush1.msra.mxu0 0.0
        %299 = vmatprep.subr.mxu0 0.0
        %300 = vmatpush1.msra.mxu0 0.0
        %301 = vmatprep.subr.mxu0 0.0
        %302 = vmatpush1.msra.mxu0 0.0
        %303 = vmatprep.mubr.f32.mxu0 0.0
        %304 = vmatmul.mubr.f32.gmra.mrb[0].mxu0 %v237
        %v305 = vpop.f32.mrb[0].mxu0
        %v306 = vadd.f32 0.0, %v305
        %v307 = vpop.f32.mrb[0].mxu0
        %v308 = vadd.f32 0.0, %v307
        %309 = vdwg.mxu0
        %v310 = vld [vmem:[%s1] sm:$0xff]
        %v311 = vld [vmem:[%s1 + $0x8] sm:$0xff]
        %v312 = vld [vmem:[#allocation2 + $0x40] sm:$0xff]
        %v313 = vld [vmem:[#allocation2 + $0x48] sm:$0xff]
        %v314 = vld [vmem:[#allocation2 + $0x50] sm:$0xff]
        %v315 = vld [vmem:[#allocation2 + $0x58] sm:$0xff]
        %v316 = vld [vmem:[#allocation2 + $0x60] sm:$0xff]
        %v317 = vld [vmem:[#allocation2 + $0x68] sm:$0xff]
        %v318 = vld [vmem:[#allocation2 + $0x70] sm:$0xff]
        %v319 = vld [vmem:[#allocation2 + $0x78] sm:$0xff]
        %320 = vmatprep.subr.mxu0 %v313
        %321 = vmatpush1.msra.mxu0 %v312
        %322 = vmatprep.subr.mxu0 %v315
        %323 = vmatpush1.msra.mxu0 %v314
        %324 = vmatprep.subr.mxu0 %v317
        %325 = vmatpush1.msra.mxu0 %v316
        %326 = vmatprep.subr.mxu0 %v319
        %327 = vmatpush1.msra.mxu0 %v318
        %328 = vmatprep.subr.mxu0 0.0
        %329 = vmatpush1.msra.mxu0 0.0
        %330 = vmatprep.subr.mxu0 0.0
        %331 = vmatpush1.msra.mxu0 0.0
        %332 = vmatprep.subr.mxu0 0.0
        %333 = vmatpush1.msra.mxu0 0.0
        %334 = vmatprep.subr.mxu0 0.0
        %335 = vmatpush1.msra.mxu0 0.0
        %336 = vmatprep.subr.mxu0 0.0
        %337 = vmatpush1.msra.mxu0 0.0
        %338 = vmatprep.subr.mxu0 0.0
        %339 = vmatpush1.msra.mxu0 0.0
        %340 = vmatprep.subr.mxu0 0.0
        %341 = vmatpush1.msra.mxu0 0.0
        %342 = vmatprep.subr.mxu0 0.0
        %343 = vmatpush1.msra.mxu0 0.0
        %344 = vmatprep.subr.mxu0 0.0
        %345 = vmatpush1.msra.mxu0 0.0
        %346 = vmatprep.subr.mxu0 0.0
        %347 = vmatpush1.msra.mxu0 0.0
        %348 = vmatprep.subr.mxu0 0.0
        %349 = vmatpush1.msra.mxu0 0.0
        %350 = vmatprep.subr.mxu0 0.0
        %351 = vmatpush1.msra.mxu0 0.0
        %352 = vmatprep.subr.mxu0 0.0
        %353 = vmatpush1.msra.mxu0 0.0
        %354 = vmatprep.subr.mxu0 0.0
        %355 = vmatpush1.msra.mxu0 0.0
        %356 = vmatprep.subr.mxu0 0.0
        %357 = vmatpush1.msra.mxu0 0.0
        %358 = vmatprep.subr.mxu0 0.0
        %359 = vmatpush1.msra.mxu0 0.0
        %360 = vmatprep.subr.mxu0 0.0
        %361 = vmatpush1.msra.mxu0 0.0
        %362 = vmatprep.subr.mxu0 0.0
        %363 = vmatpush1.msra.mxu0 0.0
        %364 = vmatprep.subr.mxu0 0.0
        %365 = vmatpush1.msra.mxu0 0.0
        %366 = vmatprep.subr.mxu0 0.0
        %367 = vmatpush1.msra.mxu0 0.0
        %368 = vmatprep.subr.mxu0 0.0
        %369 = vmatpush1.msra.mxu0 0.0
        %370 = vmatprep.subr.mxu0 0.0
        %371 = vmatpush1.msra.mxu0 0.0
        %372 = vmatprep.subr.mxu0 0.0
        %373 = vmatpush1.msra.mxu0 0.0
        %374 = vmatprep.subr.mxu0 0.0
        %375 = vmatpush1.msra.mxu0 0.0
        %376 = vmatprep.subr.mxu0 0.0
        %377 = vmatpush1.msra.mxu0 0.0
        %378 = vmatprep.subr.mxu0 0.0
        %379 = vmatpush1.msra.mxu0 0.0
        %380 = vmatprep.subr.mxu0 0.0
        %381 = vmatpush1.msra.mxu0 0.0
        %382 = vmatprep.subr.mxu0 0.0
        %383 = vmatpush1.msra.mxu0 0.0
        %384 = vmatprep.mubr.f32.mxu0 0.0
        %385 = vmatmul.mubr.f32.gmra.mrb[0].mxu0 %v237
        %v386 = vpop.f32.mrb[0].mxu0
        %v387 = vadd.f32 0.0, %v386
        %v388 = vpop.f32.mrb[0].mxu0
        %v389 = vadd.f32 0.0, %v388
        %390 = vdwg.mxu0
        %v391 = vld [vmem:[%s1 + $0x10] sm:$0xff]
        %v392 = vld [vmem:[%s1 + $0x18] sm:$0xff]
        %vm393 = vcmask 64512
        %v395 = vsel %vm393, %v391, 0
        %v398 = vsel %vm393, %v392, 0
        %400 = vmatprep.subr.mxu0 %v389
        %401 = vmatpush1.msra.mxu0 %v387
        %402 = vmatprep.subr.mxu0 0.0
        %403 = vmatpush1.msra.mxu0 0.0
        %404 = vmatprep.subr.mxu0 0.0
        %405 = vmatpush1.msra.mxu0 0.0
        %406 = vmatprep.subr.mxu0 0.0
        %407 = vmatpush1.msra.mxu0 0.0
        %408 = vmatprep.subr.mxu0 0.0
        %409 = vmatpush1.msra.mxu0 0.0
        %410 = vmatprep.subr.mxu0 0.0
        %411 = vmatpush1.msra.mxu0 0.0
        %412 = vmatprep.subr.mxu0 0.0
        %413 = vmatpush1.msra.mxu0 0.0
        %414 = vmatprep.subr.mxu0 0.0
        %415 = vmatpush1.msra.mxu0 0.0
        %416 = vmatprep.subr.mxu0 0.0
        %417 = vmatpush1.msra.mxu0 0.0
        %418 = vmatprep.subr.mxu0 0.0
        %419 = vmatpush1.msra.mxu0 0.0
        %420 = vmatprep.subr.mxu0 0.0
        %421 = vmatpush1.msra.mxu0 0.0
        %422 = vmatprep.subr.mxu0 0.0
        %423 = vmatpush1.msra.mxu0 0.0
        %424 = vmatprep.subr.mxu0 0.0
        %425 = vmatpush1.msra.mxu0 0.0
        %426 = vmatprep.subr.mxu0 0.0
        %427 = vmatpush1.msra.mxu0 0.0
        %428 = vmatprep.subr.mxu0 0.0
        %429 = vmatpush1.msra.mxu0 0.0
        %430 = vmatprep.subr.mxu0 0.0
        %431 = vmatpush1.msra.mxu0 0.0
        %432 = vmatprep.subr.mxu0 0.0
        %433 = vmatpush1.msra.mxu0 0.0
        %434 = vmatprep.subr.mxu0 0.0
        %435 = vmatpush1.msra.mxu0 0.0
        %436 = vmatprep.subr.mxu0 0.0
        %437 = vmatpush1.msra.mxu0 0.0
        %438 = vmatprep.subr.mxu0 0.0
        %439 = vmatpush1.msra.mxu0 0.0
        %440 = vmatprep.subr.mxu0 0.0
        %441 = vmatpush1.msra.mxu0 0.0
        %442 = vmatprep.subr.mxu0 0.0
        %443 = vmatpush1.msra.mxu0 0.0
        %444 = vmatprep.subr.mxu0 0.0
        %445 = vmatpush1.msra.mxu0 0.0
        %446 = vmatprep.subr.mxu0 0.0
        %447 = vmatpush1.msra.mxu0 0.0
        %448 = vmatprep.subr.mxu0 0.0
        %449 = vmatpush1.msra.mxu0 0.0
        %450 = vmatprep.subr.mxu0 0.0
        %451 = vmatpush1.msra.mxu0 0.0
        %452 = vmatprep.subr.mxu0 0.0
        %453 = vmatpush1.msra.mxu0 0.0
        %454 = vmatprep.subr.mxu0 0.0
        %455 = vmatpush1.msra.mxu0 0.0
        %456 = vmatprep.subr.mxu0 0.0
        %457 = vmatpush1.msra.mxu0 0.0
        %458 = vmatprep.subr.mxu0 0.0
        %459 = vmatpush1.msra.mxu0 0.0
        %460 = vmatprep.subr.mxu0 0.0
        %461 = vmatpush1.msra.mxu0 0.0
        %462 = vmatprep.subr.mxu0 0.0
        %463 = vmatpush1.msra.mxu0 0.0
        %464 = vmatprep.mubr.f32.mxu0 0.0
        %465 = vmatmul.mubr.f32.gmra.mrb[0].mxu0 %v395
        %v466 = vpop.f32.mrb[0].mxu0
        %v467 = vadd.f32 0.0, %v466
        %v468 = vpop.f32.mrb[0].mxu0
        %469 = vmatprep.mubr.f32.mxu0 0.0
        %470 = vmatmul.mubr.f32.gmra.mrb[0].mxu0 %v398
        %v471 = vpop.f32.mrb[0].mxu0
        %v472 = vadd.f32 0.0, %v471
        %v473 = vpop.f32.mrb[0].mxu0
        %474 = vdwg.mxu0
        %v476 = vsel %vm393, %v310, 0
        %v479 = vsel %vm393, %v311, 0
        %481 = vmatprep.subr.mxu0 %v308
        %482 = vmatpush1.msra.mxu0 %v306
        %483 = vmatprep.subr.mxu0 0.0
        %484 = vmatpush1.msra.mxu0 0.0
        %485 = vmatprep.subr.mxu0 0.0
        %486 = vmatpush1.msra.mxu0 0.0
        %487 = vmatprep.subr.mxu0 0.0
        %488 = vmatpush1.msra.mxu0 0.0
        %489 = vmatprep.subr.mxu0 0.0
        %490 = vmatpush1.msra.mxu0 0.0
        %491 = vmatprep.subr.mxu0 0.0
        %492 = vmatpush1.msra.mxu0 0.0
        %493 = vmatprep.subr.mxu0 0.0
        %494 = vmatpush1.msra.mxu0 0.0
        %495 = vmatprep.subr.mxu0 0.0
        %496 = vmatpush1.msra.mxu0 0.0
        %497 = vmatprep.subr.mxu0 0.0
        %498 = vmatpush1.msra.mxu0 0.0
        %499 = vmatprep.subr.mxu0 0.0
        %500 = vmatpush1.msra.mxu0 0.0
        %501 = vmatprep.subr.mxu0 0.0
        %502 = vmatpush1.msra.mxu0 0.0
        %503 = vmatprep.subr.mxu0 0.0
        %504 = vmatpush1.msra.mxu0 0.0
        %505 = vmatprep.subr.mxu0 0.0
        %506 = vmatpush1.msra.mxu0 0.0
        %507 = vmatprep.subr.mxu0 0.0
        %508 = vmatpush1.msra.mxu0 0.0
        %509 = vmatprep.subr.mxu0 0.0
        %510 = vmatpush1.msra.mxu0 0.0
        %511 = vmatprep.subr.mxu0 0.0
        %512 = vmatpush1.msra.mxu0 0.0
        %513 = vmatprep.subr.mxu0 0.0
        %514 = vmatpush1.msra.mxu0 0.0
        %515 = vmatprep.subr.mxu0 0.0
        %516 = vmatpush1.msra.mxu0 0.0
        %517 = vmatprep.subr.mxu0 0.0
        %518 = vmatpush1.msra.mxu0 0.0
        %519 = vmatprep.subr.mxu0 0.0
        %520 = vmatpush1.msra.mxu0 0.0
        %521 = vmatprep.subr.mxu0 0.0
        %522 = vmatpush1.msra.mxu0 0.0
        %523 = vmatprep.subr.mxu0 0.0
        %524 = vmatpush1.msra.mxu0 0.0
        %525 = vmatprep.subr.mxu0 0.0
        %526 = vmatpush1.msra.mxu0 0.0
        %527 = vmatprep.subr.mxu0 0.0
        %528 = vmatpush1.msra.mxu0 0.0
        %529 = vmatprep.subr.mxu0 0.0
        %530 = vmatpush1.msra.mxu0 0.0
        %531 = vmatprep.subr.mxu0 0.0
        %532 = vmatpush1.msra.mxu0 0.0
        %533 = vmatprep.subr.mxu0 0.0
        %534 = vmatpush1.msra.mxu0 0.0
        %535 = vmatprep.subr.mxu0 0.0
        %536 = vmatpush1.msra.mxu0 0.0
        %537 = vmatprep.subr.mxu0 0.0
        %538 = vmatpush1.msra.mxu0 0.0
        %539 = vmatprep.subr.mxu0 0.0
        %540 = vmatpush1.msra.mxu0 0.0
        %541 = vmatprep.subr.mxu0 0.0
        %542 = vmatpush1.msra.mxu0 0.0
        %543 = vmatprep.subr.mxu0 0.0
        %544 = vmatpush1.msra.mxu0 0.0
        %545 = vmatprep.mubr.f32.mxu0 0.0
        %546 = vmatmul.mubr.f32.gmra.mrb[0].mxu0 %v476
        %v547 = vpop.f32.mrb[0].mxu0
        %v548 = vadd.f32 %v467, %v547
        %v549 = vpop.f32.mrb[0].mxu0
        %550 = vmatprep.mubr.f32.mxu0 0.0
        %551 = vmatmul.mubr.f32.gmra.mrb[0].mxu0 %v479
        %v552 = vpop.f32.mrb[0].mxu0
        %v553 = vadd.f32 %v472, %v552
        %v554 = vpop.f32.mrb[0].mxu0
        %555 = vdwg.mxu0
        %v556 = vld [vmem:[#allocation2 + $0x80] sm:$0xff]
        %v557 = vld [vmem:[#allocation2 + $0x88] sm:$0xff]
        %v558 = vld [vmem:[#allocation2 + $0x90] sm:$0xff]
        %v559 = vld [vmem:[#allocation2 + $0x98] sm:$0xff]
        %v560 = vld [vmem:[#allocation2 + $0xa0] sm:$0xff]
        %v561 = vld [vmem:[#allocation2 + $0xa8] sm:$0xff]
        %v562 = vld [vmem:[#allocation2 + $0xb0] sm:$0xff]
        %v563 = vld [vmem:[#allocation2 + $0xb8] sm:$0xff]
        %564 = vmatprep.subr.mxu0 %v557
        %565 = vmatpush1.msra.mxu0 %v556
        %566 = vmatprep.subr.mxu0 %v559
        %567 = vmatpush1.msra.mxu0 %v558
        %568 = vmatprep.subr.mxu0 %v561
        %569 = vmatpush1.msra.mxu0 %v560
        %570 = vmatprep.subr.mxu0 %v563
        %571 = vmatpush1.msra.mxu0 %v562
        %572 = vmatprep.subr.mxu0 0.0
        %573 = vmatpush1.msra.mxu0 0.0
        %574 = vmatprep.subr.mxu0 0.0
        %575 = vmatpush1.msra.mxu0 0.0
        %576 = vmatprep.subr.mxu0 0.0
        %577 = vmatpush1.msra.mxu0 0.0
        %578 = vmatprep.subr.mxu0 0.0
        %579 = vmatpush1.msra.mxu0 0.0
        %580 = vmatprep.subr.mxu0 0.0
        %581 = vmatpush1.msra.mxu0 0.0
        %582 = vmatprep.subr.mxu0 0.0
        %583 = vmatpush1.msra.mxu0 0.0
        %584 = vmatprep.subr.mxu0 0.0
        %585 = vmatpush1.msra.mxu0 0.0
        %586 = vmatprep.subr.mxu0 0.0
        %587 = vmatpush1.msra.mxu0 0.0
        %588 = vmatprep.subr.mxu0 0.0
        %589 = vmatpush1.msra.mxu0 0.0
        %590 = vmatprep.subr.mxu0 0.0
        %591 = vmatpush1.msra.mxu0 0.0
        %592 = vmatprep.subr.mxu0 0.0
        %593 = vmatpush1.msra.mxu0 0.0
        %594 = vmatprep.subr.mxu0 0.0
        %595 = vmatpush1.msra.mxu0 0.0
        %596 = vmatprep.subr.mxu0 0.0
        %597 = vmatpush1.msra.mxu0 0.0
        %598 = vmatprep.subr.mxu0 0.0
        %599 = vmatpush1.msra.mxu0 0.0
        %600 = vmatprep.subr.mxu0 0.0
        %601 = vmatpush1.msra.mxu0 0.0
        %602 = vmatprep.subr.mxu0 0.0
        %603 = vmatpush1.msra.mxu0 0.0
        %604 = vmatprep.subr.mxu0 0.0
        %605 = vmatpush1.msra.mxu0 0.0
        %606 = vmatprep.subr.mxu0 0.0
        %607 = vmatpush1.msra.mxu0 0.0
        %608 = vmatprep.subr.mxu0 0.0
        %609 = vmatpush1.msra.mxu0 0.0
        %610 = vmatprep.subr.mxu0 0.0
        %611 = vmatpush1.msra.mxu0 0.0
        %612 = vmatprep.subr.mxu0 0.0
        %613 = vmatpush1.msra.mxu0 0.0
        %614 = vmatprep.subr.mxu0 0.0
        %615 = vmatpush1.msra.mxu0 0.0
        %616 = vmatprep.subr.mxu0 0.0
        %617 = vmatpush1.msra.mxu0 0.0
        %618 = vmatprep.subr.mxu0 0.0
        %619 = vmatpush1.msra.mxu0 0.0
        %620 = vmatprep.subr.mxu0 0.0
        %621 = vmatpush1.msra.mxu0 0.0
        %622 = vmatprep.subr.mxu0 0.0
        %623 = vmatpush1.msra.mxu0 0.0
        %624 = vmatprep.subr.mxu0 0.0
        %625 = vmatpush1.msra.mxu0 0.0
        %626 = vmatprep.subr.mxu0 0.0
        %627 = vmatpush1.msra.mxu0 0.0
        %628 = vmatprep.mubr.f32.mxu0 0.0
        %629 = vmatmul.mubr.f32.gmra.mrb[0].mxu0 %v237
        %v630 = vpop.f32.mrb[0].mxu0
        %v631 = vadd.f32 0.0, %v630
        %v632 = vpop.f32.mrb[0].mxu0
        %v633 = vadd.f32 0.0, %v632
        %634 = vdwg.mxu0
        %v635 = vld [vmem:[%s1 + $0x20] sm:$0xff]
        %v636 = vld [vmem:[%s1 + $0x28] sm:$0xff]
        %v638 = vsel %vm393, %v635, 0
        %v641 = vsel %vm393, %v636, 0
        %643 = vmatprep.subr.mxu0 %v633
        %644 = vmatpush1.msra.mxu0 %v631
        %645 = vmatprep.subr.mxu0 0.0
        %646 = vmatpush1.msra.mxu0 0.0
        %647 = vmatprep.subr.mxu0 0.0
        %648 = vmatpush1.msra.mxu0 0.0
        %649 = vmatprep.subr.mxu0 0.0
        %650 = vmatpush1.msra.mxu0 0.0
        %651 = vmatprep.subr.mxu0 0.0
        %652 = vmatpush1.msra.mxu0 0.0
        %653 = vmatprep.subr.mxu0 0.0
        %654 = vmatpush1.msra.mxu0 0.0
        %655 = vmatprep.subr.mxu0 0.0
        %656 = vmatpush1.msra.mxu0 0.0
        %657 = vmatprep.subr.mxu0 0.0
        %658 = vmatpush1.msra.mxu0 0.0
        %659 = vmatprep.subr.mxu0 0.0
        %660 = vmatpush1.msra.mxu0 0.0
        %661 = vmatprep.subr.mxu0 0.0
        %662 = vmatpush1.msra.mxu0 0.0
        %663 = vmatprep.subr.mxu0 0.0
        %664 = vmatpush1.msra.mxu0 0.0
        %665 = vmatprep.subr.mxu0 0.0
        %666 = vmatpush1.msra.mxu0 0.0
        %667 = vmatprep.subr.mxu0 0.0
        %668 = vmatpush1.msra.mxu0 0.0
        %669 = vmatprep.subr.mxu0 0.0
        %670 = vmatpush1.msra.mxu0 0.0
        %671 = vmatprep.subr.mxu0 0.0
        %672 = vmatpush1.msra.mxu0 0.0
        %673 = vmatprep.subr.mxu0 0.0
        %674 = vmatpush1.msra.mxu0 0.0
        %675 = vmatprep.subr.mxu0 0.0
        %676 = vmatpush1.msra.mxu0 0.0
        %677 = vmatprep.subr.mxu0 0.0
        %678 = vmatpush1.msra.mxu0 0.0
        %679 = vmatprep.subr.mxu0 0.0
        %680 = vmatpush1.msra.mxu0 0.0
        %681 = vmatprep.subr.mxu0 0.0
        %682 = vmatpush1.msra.mxu0 0.0
        %683 = vmatprep.subr.mxu0 0.0
        %684 = vmatpush1.msra.mxu0 0.0
        %685 = vmatprep.subr.mxu0 0.0
        %686 = vmatpush1.msra.mxu0 0.0
        %687 = vmatprep.subr.mxu0 0.0
        %688 = vmatpush1.msra.mxu0 0.0
        %689 = vmatprep.subr.mxu0 0.0
        %690 = vmatpush1.msra.mxu0 0.0
        %691 = vmatprep.subr.mxu0 0.0
        %692 = vmatpush1.msra.mxu0 0.0
        %693 = vmatprep.subr.mxu0 0.0
        %694 = vmatpush1.msra.mxu0 0.0
        %695 = vmatprep.subr.mxu0 0.0
        %696 = vmatpush1.msra.mxu0 0.0
        %697 = vmatprep.subr.mxu0 0.0
        %698 = vmatpush1.msra.mxu0 0.0
        %699 = vmatprep.subr.mxu0 0.0
        %700 = vmatpush1.msra.mxu0 0.0
        %701 = vmatprep.subr.mxu0 0.0
        %702 = vmatpush1.msra.mxu0 0.0
        %703 = vmatprep.subr.mxu0 0.0
        %704 = vmatpush1.msra.mxu0 0.0
        %705 = vmatprep.subr.mxu0 0.0
        %706 = vmatpush1.msra.mxu0 0.0
        %707 = vmatprep.mubr.f32.mxu0 0.0
        %708 = vmatmul.mubr.f32.gmra.mrb[0].mxu0 %v638
        %v709 = vpop.f32.mrb[0].mxu0
        %v710 = vadd.f32 0.0, %v709
        %v711 = vpop.f32.mrb[0].mxu0
        %712 = vmatprep.mubr.f32.mxu0 0.0
        %713 = vmatmul.mubr.f32.gmra.mrb[0].mxu0 %v641
        %v714 = vpop.f32.mrb[0].mxu0
        %v715 = vadd.f32 0.0, %v714
        %v716 = vpop.f32.mrb[0].mxu0
        %717 = vdwg.mxu0
        %v718 = vadd.f32 %v548, %v710
        %v719 = vadd.f32 %v553, %v715
        %v720 = vld [vmem:[#allocation4] ss:$8 sm:$0x3]
        %v722 = vlaneseq
        %v723 = vshrl.u32 %v722, 7
        %v724 = vsub.s32 0, %v723
        %v725 = vrot.slane %v720, %v724
        %v727 = vadd.f32 %v718, %v725
        %v728 = vadd.f32 %v719, %v725
        %v729 = vmax.f32 %v727, 0.0
        %v730 = vmax.f32 %v728, 0.0
        %v731 = vld [vmem:[#allocation2 + $0xc0] sm:$0xff]
        %v732 = vld [vmem:[#allocation2 + $0xc8] sm:$0xff]
        %v733 = vld [vmem:[#allocation2 + $0xd0] sm:$0xff]
        %v734 = vld [vmem:[#allocation2 + $0xd8] sm:$0xff]
        %v735 = vld [vmem:[#allocation2 + $0xe0] sm:$0xff]
        %v736 = vld [vmem:[#allocation2 + $0xe8] sm:$0xff]
        %v737 = vld [vmem:[#allocation2 + $0xf0] sm:$0xff]
        %v738 = vld [vmem:[#allocation2 + $0xf8] sm:$0xff]
        %v739 = vld [vmem:[#allocation2 + $0x100] sm:$0xff]
        %v740 = vld [vmem:[#allocation2 + $0x108] sm:$0xff]
        %v741 = vld [vmem:[#allocation2 + $0x110] sm:$0xff]
        %v742 = vld [vmem:[#allocation2 + $0x118] sm:$0xff]
        %v743 = vld [vmem:[#allocation2 + $0x120] sm:$0xff]
        %v744 = vld [vmem:[#allocation2 + $0x128] sm:$0xff]
        %v745 = vld [vmem:[#allocation2 + $0x130] sm:$0xff]
        %v746 = vld [vmem:[#allocation2 + $0x138] sm:$0xff]
        %v747 = vld [vmem:[#allocation2 + $0x140] sm:$0xff]
        %v748 = vld [vmem:[#allocation2 + $0x148] sm:$0xff]
        %v749 = vld [vmem:[#allocation2 + $0x150] sm:$0xff]
        %v750 = vld [vmem:[#allocation2 + $0x158] sm:$0xff]
        %v751 = vld [vmem:[#allocation2 + $0x160] sm:$0xff]
        %v752 = vld [vmem:[#allocation2 + $0x168] sm:$0xff]
        %v753 = vld [vmem:[#allocation2 + $0x170] sm:$0xff]
        %v754 = vld [vmem:[#allocation2 + $0x178] sm:$0xff]
        %v755 = vld [vmem:[#allocation2 + $0x180] sm:$0xff]
        %v756 = vld [vmem:[#allocation2 + $0x188] sm:$0xff]
        %v757 = vld [vmem:[#allocation2 + $0x190] sm:$0xff]
        %v758 = vld [vmem:[#allocation2 + $0x198] sm:$0xff]
        %v759 = vld [vmem:[#allocation2 + $0x1a0] sm:$0xff]
        %v760 = vld [vmem:[#allocation2 + $0x1a8] sm:$0xff]
        %v761 = vld [vmem:[#allocation2 + $0x1b0] sm:$0xff]
        %v762 = vld [vmem:[#allocation2 + $0x1b8] sm:$0xff]
        %763 = vmatprep.subr.mxu0 %v732
        %764 = vmatpush1.msra.mxu0 %v731
        %765 = vmatprep.subr.mxu0 %v734
        %766 = vmatpush1.msra.mxu0 %v733
        %767 = vmatprep.subr.mxu0 %v736
        %768 = vmatpush1.msra.mxu0 %v735
        %769 = vmatprep.subr.mxu0 %v738
        %770 = vmatpush1.msra.mxu0 %v737
        %771 = vmatprep.subr.mxu0 %v740
        %772 = vmatpush1.msra.mxu0 %v739
        %773 = vmatprep.subr.mxu0 %v742
        %774 = vmatpush1.msra.mxu0 %v741
        %775 = vmatprep.subr.mxu0 %v744
        %776 = vmatpush1.msra.mxu0 %v743
        %777 = vmatprep.subr.mxu0 %v746
        %778 = vmatpush1.msra.mxu0 %v745
        %779 = vmatprep.subr.mxu0 %v748
        %780 = vmatpush1.msra.mxu0 %v747
        %781 = vmatprep.subr.mxu0 %v750
        %782 = vmatpush1.msra.mxu0 %v749
        %783 = vmatprep.subr.mxu0 %v752
        %784 = vmatpush1.msra.mxu0 %v751
        %785 = vmatprep.subr.mxu0 %v754
        %786 = vmatpush1.msra.mxu0 %v753
        %787 = vmatprep.subr.mxu0 %v756
        %788 = vmatpush1.msra.mxu0 %v755
        %789 = vmatprep.subr.mxu0 %v758
        %790 = vmatpush1.msra.mxu0 %v757
        %791 = vmatprep.subr.mxu0 %v760
        %792 = vmatpush1.msra.mxu0 %v759
        %793 = vmatprep.subr.mxu0 %v762
        %794 = vmatpush1.msra.mxu0 %v761
        %795 = vmatprep.subr.mxu0 0.0
        %796 = vmatpush1.msra.mxu0 0.0
        %797 = vmatprep.subr.mxu0 0.0
        %798 = vmatpush1.msra.mxu0 0.0
        %799 = vmatprep.subr.mxu0 0.0
        %800 = vmatpush1.msra.mxu0 0.0
        %801 = vmatprep.subr.mxu0 0.0
        %802 = vmatpush1.msra.mxu0 0.0
        %803 = vmatprep.subr.mxu0 0.0
        %804 = vmatpush1.msra.mxu0 0.0
        %805 = vmatprep.subr.mxu0 0.0
        %806 = vmatpush1.msra.mxu0 0.0
        %807 = vmatprep.subr.mxu0 0.0
        %808 = vmatpush1.msra.mxu0 0.0
        %809 = vmatprep.subr.mxu0 0.0
        %810 = vmatpush1.msra.mxu0 0.0
        %811 = vmatprep.subr.mxu0 0.0
        %812 = vmatpush1.msra.mxu0 0.0
        %813 = vmatprep.subr.mxu0 0.0
        %814 = vmatpush1.msra.mxu0 0.0
        %815 = vmatprep.subr.mxu0 0.0
        %816 = vmatpush1.msra.mxu0 0.0
        %817 = vmatprep.subr.mxu0 0.0
        %818 = vmatpush1.msra.mxu0 0.0
        %819 = vmatprep.subr.mxu0 0.0
        %820 = vmatpush1.msra.mxu0 0.0
        %821 = vmatprep.subr.mxu0 0.0
        %822 = vmatpush1.msra.mxu0 0.0
        %823 = vmatprep.subr.mxu0 0.0
        %824 = vmatpush1.msra.mxu0 0.0
        %825 = vmatprep.subr.mxu0 0.0
        %826 = vmatpush1.msra.mxu0 0.0
        %827 = vmatprep.mubr.f32.mxu0 0.0
        %828 = vmatmul.mubr.f32.gmra.mrb[0].mxu0 %v729
        %v829 = vpop.f32.mrb[0].mxu0
        %v830 = vadd.f32 0.0, %v829
        %v831 = vpop.f32.mrb[0].mxu0
        %v832 = vadd.f32 0.0, %v831
        %833 = vmatprep.mubr.f32.mxu0 0.0
        %834 = vmatmul.mubr.f32.gmra.mrb[0].mxu0 %v730
        %v835 = vpop.f32.mrb[0].mxu0
        %v836 = vadd.f32 0.0, %v835
        %v837 = vpop.f32.mrb[0].mxu0
        %v838 = vadd.f32 0.0, %v837
        %839 = vdwg.mxu0
        %v840 = vld [vmem:[%s1 + $0x30] sm:$0xff]
        %v841 = vld [vmem:[%s1 + $0x38] sm:$0xff]
        %v842 = vld [vmem:[%s1 + $0x40] sm:$0xff]
        %v843 = vld [vmem:[%s1 + $0x48] sm:$0xff]
        %v844 = vld [vmem:[#allocation2 + $0x1c0] sm:$0xff]
        %v845 = vld [vmem:[#allocation2 + $0x1c8] sm:$0xff]
        %v846 = vld [vmem:[#allocation2 + $0x1d0] sm:$0xff]
        %v847 = vld [vmem:[#allocation2 + $0x1d8] sm:$0xff]
        %v848 = vld [vmem:[#allocation2 + $0x1e0] sm:$0xff]
        %v849 = vld [vmem:[#allocation2 + $0x1e8] sm:$0xff]
        %v850 = vld [vmem:[#allocation2 + $0x1f0] sm:$0xff]
        %v851 = vld [vmem:[#allocation2 + $0x1f8] sm:$0xff]
        %v852 = vld [vmem:[#allocation2 + $0x200] sm:$0xff]
        %v853 = vld [vmem:[#allocation2 + $0x208] sm:$0xff]
        %v854 = vld [vmem:[#allocation2 + $0x210] sm:$0xff]
        %v855 = vld [vmem:[#allocation2 + $0x218] sm:$0xff]
        %v856 = vld [vmem:[#allocation2 + $0x220] sm:$0xff]
        %v857 = vld [vmem:[#allocation2 + $0x228] sm:$0xff]
        %v858 = vld [vmem:[#allocation2 + $0x230] sm:$0xff]
        %v859 = vld [vmem:[#allocation2 + $0x238] sm:$0xff]
        %v860 = vld [vmem:[#allocation2 + $0x240] sm:$0xff]
        %v861 = vld [vmem:[#allocation2 + $0x248] sm:$0xff]
        %v862 = vld [vmem:[#allocation2 + $0x250] sm:$0xff]
        %v863 = vld [vmem:[#allocation2 + $0x258] sm:$0xff]
        %v864 = vld [vmem:[#allocation2 + $0x260] sm:$0xff]
        %v865 = vld [vmem:[#allocation2 + $0x268] sm:$0xff]
        %v866 = vld [vmem:[#allocation2 + $0x270] sm:$0xff]
        %v867 = vld [vmem:[#allocation2 + $0x278] sm:$0xff]
        %v868 = vld [vmem:[#allocation2 + $0x280] sm:$0xff]
        %v869 = vld [vmem:[#allocation2 + $0x288] sm:$0xff]
        %v870 = vld [vmem:[#allocation2 + $0x290] sm:$0xff]
        %v871 = vld [vmem:[#allocation2 + $0x298] sm:$0xff]
        %v872 = vld [vmem:[#allocation2 + $0x2a0] sm:$0xff]
        %v873 = vld [vmem:[#allocation2 + $0x2a8] sm:$0xff]
        %v874 = vld [vmem:[#allocation2 + $0x2b0] sm:$0xff]
        %v875 = vld [vmem:[#allocation2 + $0x2b8] sm:$0xff]
        %876 = vmatprep.subr.mxu0 %v845
        %877 = vmatpush1.msra.mxu0 %v844
        %878 = vmatprep.subr.mxu0 %v847
        %879 = vmatpush1.msra.mxu0 %v846
        %880 = vmatprep.subr.mxu0 %v849
        %881 = vmatpush1.msra.mxu0 %v848
        %882 = vmatprep.subr.mxu0 %v851
        %883 = vmatpush1.msra.mxu0 %v850
        %884 = vmatprep.subr.mxu0 %v853
        %885 = vmatpush1.msra.mxu0 %v852
        %886 = vmatprep.subr.mxu0 %v855
        %887 = vmatpush1.msra.mxu0 %v854
        %888 = vmatprep.subr.mxu0 %v857
        %889 = vmatpush1.msra.mxu0 %v856
        %890 = vmatprep.subr.mxu0 %v859
        %891 = vmatpush1.msra.mxu0 %v858
        %892 = vmatprep.subr.mxu0 %v861
        %893 = vmatpush1.msra.mxu0 %v860
        %894 = vmatprep.subr.mxu0 %v863
        %895 = vmatpush1.msra.mxu0 %v862
        %896 = vmatprep.subr.mxu0 %v865
        %897 = vmatpush1.msra.mxu0 %v864
        %898 = vmatprep.subr.mxu0 %v867
        %899 = vmatpush1.msra.mxu0 %v866
        %900 = vmatprep.subr.mxu0 %v869
        %901 = vmatpush1.msra.mxu0 %v868
        %902 = vmatprep.subr.mxu0 %v871
        %903 = vmatpush1.msra.mxu0 %v870
        %904 = vmatprep.subr.mxu0 %v873
        %905 = vmatpush1.msra.mxu0 %v872
        %906 = vmatprep.subr.mxu0 %v875
        %907 = vmatpush1.msra.mxu0 %v874
        %908 = vmatprep.subr.mxu0 0.0
        %909 = vmatpush1.msra.mxu0 0.0
        %910 = vmatprep.subr.mxu0 0.0
        %911 = vmatpush1.msra.mxu0 0.0
        %912 = vmatprep.subr.mxu0 0.0
        %913 = vmatpush1.msra.mxu0 0.0
        %914 = vmatprep.subr.mxu0 0.0
        %915 = vmatpush1.msra.mxu0 0.0
        %916 = vmatprep.subr.mxu0 0.0
        %917 = vmatpush1.msra.mxu0 0.0
        %918 = vmatprep.subr.mxu0 0.0
        %919 = vmatpush1.msra.mxu0 0.0
        %920 = vmatprep.subr.mxu0 0.0
        %921 = vmatpush1.msra.mxu0 0.0
        %922 = vmatprep.subr.mxu0 0.0
        %923 = vmatpush1.msra.mxu0 0.0
        %924 = vmatprep.subr.mxu0 0.0
        %925 = vmatpush1.msra.mxu0 0.0
        %926 = vmatprep.subr.mxu0 0.0
        %927 = vmatpush1.msra.mxu0 0.0
        %928 = vmatprep.subr.mxu0 0.0
        %929 = vmatpush1.msra.mxu0 0.0
        %930 = vmatprep.subr.mxu0 0.0
        %931 = vmatpush1.msra.mxu0 0.0
        %932 = vmatprep.subr.mxu0 0.0
        %933 = vmatpush1.msra.mxu0 0.0
        %934 = vmatprep.subr.mxu0 0.0
        %935 = vmatpush1.msra.mxu0 0.0
        %936 = vmatprep.subr.mxu0 0.0
        %937 = vmatpush1.msra.mxu0 0.0
        %938 = vmatprep.subr.mxu0 0.0
        %939 = vmatpush1.msra.mxu0 0.0
        %940 = vmatprep.mubr.f32.mxu0 0.0
        %941 = vmatmul.mubr.f32.gmra.mrb[0].mxu0 %v729
        %v942 = vpop.f32.mrb[0].mxu0
        %v943 = vadd.f32 0.0, %v942
        %v944 = vpop.f32.mrb[0].mxu0
        %v945 = vadd.f32 0.0, %v944
        %946 = vmatprep.mubr.f32.mxu0 0.0
        %947 = vmatmul.mubr.f32.gmra.mrb[0].mxu0 %v730
        %v948 = vpop.f32.mrb[0].mxu0
        %v949 = vadd.f32 0.0, %v948
        %v950 = vpop.f32.mrb[0].mxu0
        %v951 = vadd.f32 0.0, %v950
        %952 = vdwg.mxu0
        %v953 = vld [vmem:[%s1 + $0x50] sm:$0xff]
        %v954 = vld [vmem:[%s1 + $0x58] sm:$0xff]
        %v955 = vld [vmem:[%s1 + $0x60] sm:$0xff]
        %v956 = vld [vmem:[%s1 + $0x68] sm:$0xff]
        %vm957 = vcmask 130048
        %v959 = vsel %vm957, %v953, 0
        %v962 = vsel %vm957, %v954, 0
        %v965 = vsel %vm957, %v955, 0
        %v968 = vsel %vm957, %v956, 0
        %970 = vmatprep.subr.mxu0 %v945
        %971 = vmatpush1.msra.mxu0 %v943
        %972 = vmatprep.subr.mxu0 %v951
        %973 = vmatpush1.msra.mxu0 %v949
        %974 = vmatprep.subr.mxu0 0.0
        %975 = vmatpush1.msra.mxu0 0.0
        %976 = vmatprep.subr.mxu0 0.0
        %977 = vmatpush1.msra.mxu0 0.0
        %978 = vmatprep.subr.mxu0 0.0
        %979 = vmatpush1.msra.mxu0 0.0
        %980 = vmatprep.subr.mxu0 0.0
        %981 = vmatpush1.msra.mxu0 0.0
        %982 = vmatprep.subr.mxu0 0.0
        %983 = vmatpush1.msra.mxu0 0.0
        %984 = vmatprep.subr.mxu0 0.0
        %985 = vmatpush1.msra.mxu0 0.0
        %986 = vmatprep.subr.mxu0 0.0
        %987 = vmatpush1.msra.mxu0 0.0
        %988 = vmatprep.subr.mxu0 0.0
        %989 = vmatpush1.msra.mxu0 0.0
        %990 = vmatprep.subr.mxu0 0.0
        %991 = vmatpush1.msra.mxu0 0.0
        %992 = vmatprep.subr.mxu0 0.0
        %993 = vmatpush1.msra.mxu0 0.0
        %994 = vmatprep.subr.mxu0 0.0
        %995 = vmatpush1.msra.mxu0 0.0
        %996 = vmatprep.subr.mxu0 0.0
        %997 = vmatpush1.msra.mxu0 0.0
        %998 = vmatprep.subr.mxu0 0.0
        %999 = vmatpush1.msra.mxu0 0.0
        %1000 = vmatprep.subr.mxu0 0.0
        %1001 = vmatpush1.msra.mxu0 0.0
        %1002 = vmatprep.subr.mxu0 0.0
        %1003 = vmatpush1.msra.mxu0 0.0
        %1004 = vmatprep.subr.mxu0 0.0
        %1005 = vmatpush1.msra.mxu0 0.0
        %1006 = vmatprep.subr.mxu0 0.0
        %1007 = vmatpush1.msra.mxu0 0.0
        %1008 = vmatprep.subr.mxu0 0.0
        %1009 = vmatpush1.msra.mxu0 0.0
        %1010 = vmatprep.subr.mxu0 0.0
        %1011 = vmatpush1.msra.mxu0 0.0
        %1012 = vmatprep.subr.mxu0 0.0
        %1013 = vmatpush1.msra.mxu0 0.0
        %1014 = vmatprep.subr.mxu0 0.0
        %1015 = vmatpush1.msra.mxu0 0.0
        %1016 = vmatprep.subr.mxu0 0.0
        %1017 = vmatpush1.msra.mxu0 0.0
        %1018 = vmatprep.subr.mxu0 0.0
        %1019 = vmatpush1.msra.mxu0 0.0
        %1020 = vmatprep.subr.mxu0 0.0
        %1021 = vmatpush1.msra.mxu0 0.0
        %1022 = vmatprep.subr.mxu0 0.0
        %1023 = vmatpush1.msra.mxu0 0.0
        %1024 = vmatprep.subr.mxu0 0.0
        %1025 = vmatpush1.msra.mxu0 0.0
        %1026 = vmatprep.subr.mxu0 0.0
        %1027 = vmatpush1.msra.mxu0 0.0
        %1028 = vmatprep.subr.mxu0 0.0
        %1029 = vmatpush1.msra.mxu0 0.0
        %1030 = vmatprep.subr.mxu0 0.0
        %1031 = vmatpush1.msra.mxu0 0.0
        %1032 = vmatprep.subr.mxu0 0.0
        %1033 = vmatpush1.msra.mxu0 0.0
        %1034 = vmatprep.mubr.f32.mxu0 0.0
        %1035 = vmatmul.mubr.f32.gmra.mrb[0].mxu0 %v959
        %v1036 = vpop.f32.mrb[0].mxu0
        %v1037 = vadd.f32 0.0, %v1036
        %v1038 = vpop.f32.mrb[0].mxu0
        %v1039 = vadd.f32 0.0, %v1038
        %1040 = vmatprep.mubr.f32.mxu0 0.0
        %1041 = vmatmul.mubr.f32.gmra.mrb[0].mxu0 %v962
        %v1042 = vpop.f32.mrb[0].mxu0
        %v1043 = vadd.f32 0.0, %v1042
        %v1044 = vpop.f32.mrb[0].mxu0
        %v1045 = vadd.f32 0.0, %v1044
        %1046 = vmatprep.mubr.f32.mxu0 0.0
        %1047 = vmatmul.mubr.f32.gmra.mrb[0].mxu0 %v965
        %v1048 = vpop.f32.mrb[0].mxu0
        %v1049 = vadd.f32 0.0, %v1048
        %v1050 = vpop.f32.mrb[0].mxu0
        %v1051 = vadd.f32 0.0, %v1050
        %1052 = vmatprep.mubr.f32.mxu0 0.0
        %1053 = vmatmul.mubr.f32.gmra.mrb[0].mxu0 %v968
        %v1054 = vpop.f32.mrb[0].mxu0
        %v1055 = vadd.f32 0.0, %v1054
        %v1056 = vpop.f32.mrb[0].mxu0
        %v1057 = vadd.f32 0.0, %v1056
        %1058 = vdwg.mxu0
        %v1060 = vsel %vm957, %v840, 0
        %v1063 = vsel %vm957, %v841, 0
        %v1066 = vsel %vm957, %v842, 0
        %v1069 = vsel %vm957, %v843, 0
        %1071 = vmatprep.subr.mxu0 %v832
        %1072 = vmatpush1.msra.mxu0 %v830
        %1073 = vmatprep.subr.mxu0 %v838
        %1074 = vmatpush1.msra.mxu0 %v836
        %1075 = vmatprep.subr.mxu0 0.0
        %1076 = vmatpush1.msra.mxu0 0.0
        %1077 = vmatprep.subr.mxu0 0.0
        %1078 = vmatpush1.msra.mxu0 0.0
        %1079 = vmatprep.subr.mxu0 0.0
        %1080 = vmatpush1.msra.mxu0 0.0
        %1081 = vmatprep.subr.mxu0 0.0
        %1082 = vmatpush1.msra.mxu0 0.0
        %1083 = vmatprep.subr.mxu0 0.0
        %1084 = vmatpush1.msra.mxu0 0.0
        %1085 = vmatprep.subr.mxu0 0.0
        %1086 = vmatpush1.msra.mxu0 0.0
        %1087 = vmatprep.subr.mxu0 0.0
        %1088 = vmatpush1.msra.mxu0 0.0
        %1089 = vmatprep.subr.mxu0 0.0
        %1090 = vmatpush1.msra.mxu0 0.0
        %1091 = vmatprep.subr.mxu0 0.0
        %1092 = vmatpush1.msra.mxu0 0.0
        %1093 = vmatprep.subr.mxu0 0.0
        %1094 = vmatpush1.msra.mxu0 0.0
        %1095 = vmatprep.subr.mxu0 0.0
        %1096 = vmatpush1.msra.mxu0 0.0
        %1097 = vmatprep.subr.mxu0 0.0
        %1098 = vmatpush1.msra.mxu0 0.0
        %1099 = vmatprep.subr.mxu0 0.0
        %1100 = vmatpush1.msra.mxu0 0.0
        %1101 = vmatprep.subr.mxu0 0.0
        %1102 = vmatpush1.msra.mxu0 0.0
        %1103 = vmatprep.subr.mxu0 0.0
        %1104 = vmatpush1.msra.mxu0 0.0
        %1105 = vmatprep.subr.mxu0 0.0
        %1106 = vmatpush1.msra.mxu0 0.0
        %1107 = vmatprep.subr.mxu0 0.0
        %1108 = vmatpush1.msra.mxu0 0.0
        %1109 = vmatprep.subr.mxu0 0.0
        %1110 = vmatpush1.msra.mxu0 0.0
        %1111 = vmatprep.subr.mxu0 0.0
        %1112 = vmatpush1.msra.mxu0 0.0
        %1113 = vmatprep.subr.mxu0 0.0
        %1114 = vmatpush1.msra.mxu0 0.0
        %1115 = vmatprep.subr.mxu0 0.0
        %1116 = vmatpush1.msra.mxu0 0.0
        %1117 = vmatprep.subr.mxu0 0.0
        %1118 = vmatpush1.msra.mxu0 0.0
        %1119 = vmatprep.subr.mxu0 0.0
        %1120 = vmatpush1.msra.mxu0 0.0
        %1121 = vmatprep.subr.mxu0 0.0
        %1122 = vmatpush1.msra.mxu0 0.0
        %1123 = vmatprep.subr.mxu0 0.0
        %1124 = vmatpush1.msra.mxu0 0.0
        %1125 = vmatprep.subr.mxu0 0.0
        %1126 = vmatpush1.msra.mxu0 0.0
        %1127 = vmatprep.subr.mxu0 0.0
        %1128 = vmatpush1.msra.mxu0 0.0
        %1129 = vmatprep.subr.mxu0 0.0
        %1130 = vmatpush1.msra.mxu0 0.0
        %1131 = vmatprep.subr.mxu0 0.0
        %1132 = vmatpush1.msra.mxu0 0.0
        %1133 = vmatprep.subr.mxu0 0.0
        %1134 = vmatpush1.msra.mxu0 0.0
        %1135 = vmatprep.mubr.f32.mxu0 0.0
        %1136 = vmatmul.mubr.f32.gmra.mrb[0].mxu0 %v1060
        %v1137 = vpop.f32.mrb[0].mxu0
        %v1138 = vadd.f32 %v1037, %v1137
        %v1139 = vpop.f32.mrb[0].mxu0
        %v1140 = vadd.f32 %v1039, %v1139
        %1141 = vmatprep.mubr.f32.mxu0 0.0
        %1142 = vmatmul.mubr.f32.gmra.mrb[0].mxu0 %v1063
        %v1143 = vpop.f32.mrb[0].mxu0
        %v1144 = vadd.f32 %v1043, %v1143
        %v1145 = vpop.f32.mrb[0].mxu0
        %v1146 = vadd.f32 %v1045, %v1145
        %1147 = vmatprep.mubr.f32.mxu0 0.0
        %1148 = vmatmul.mubr.f32.gmra.mrb[0].mxu0 %v1066
        %v1149 = vpop.f32.mrb[0].mxu0
        %v1150 = vadd.f32 %v1049, %v1149
        %v1151 = vpop.f32.mrb[0].mxu0
        %v1152 = vadd.f32 %v1051, %v1151
        %1153 = vmatprep.mubr.f32.mxu0 0.0
        %1154 = vmatmul.mubr.f32.gmra.mrb[0].mxu0 %v1069
        %v1155 = vpop.f32.mrb[0].mxu0
        %v1156 = vadd.f32 %v1055, %v1155
        %v1157 = vpop.f32.mrb[0].mxu0
        %v1158 = vadd.f32 %v1057, %v1157
        %1159 = vdwg.mxu0
        %v1160 = vld [vmem:[#allocation2 + $0x2c0] sm:$0xff]
        %v1161 = vld [vmem:[#allocation2 + $0x2c8] sm:$0xff]
        %v1162 = vld [vmem:[#allocation2 + $0x2d0] sm:$0xff]
        %v1163 = vld [vmem:[#allocation2 + $0x2d8] sm:$0xff]
        %v1164 = vld [vmem:[#allocation2 + $0x2e0] sm:$0xff]
        %v1165 = vld [vmem:[#allocation2 + $0x2e8] sm:$0xff]
        %v1166 = vld [vmem:[#allocation2 + $0x2f0] sm:$0xff]
        %v1167 = vld [vmem:[#allocation2 + $0x2f8] sm:$0xff]
        %v1168 = vld [vmem:[#allocation2 + $0x300] sm:$0xff]
        %v1169 = vld [vmem:[#allocation2 + $0x308] sm:$0xff]
        %v1170 = vld [vmem:[#allocation2 + $0x310] sm:$0xff]
        %v1171 = vld [vmem:[#allocation2 + $0x318] sm:$0xff]
        %v1172 = vld [vmem:[#allocation2 + $0x320] sm:$0xff]
        %v1173 = vld [vmem:[#allocation2 + $0x328] sm:$0xff]
        %v1174 = vld [vmem:[#allocation2 + $0x330] sm:$0xff]
        %v1175 = vld [vmem:[#allocation2 + $0x338] sm:$0xff]
        %v1176 = vld [vmem:[#allocation2 + $0x340] sm:$0xff]
        %v1177 = vld [vmem:[#allocation2 + $0x348] sm:$0xff]
        %v1178 = vld [vmem:[#allocation2 + $0x350] sm:$0xff]
        %v1179 = vld [vmem:[#allocation2 + $0x358] sm:$0xff]
        %v1180 = vld [vmem:[#allocation2 + $0x360] sm:$0xff]
        %v1181 = vld [vmem:[#allocation2 + $0x368] sm:$0xff]
        %v1182 = vld [vmem:[#allocation2 + $0x370] sm:$0xff]
        %v1183 = vld [vmem:[#allocation2 + $0x378] sm:$0xff]
        %v1184 = vld [vmem:[#allocation2 + $0x380] sm:$0xff]
        %v1185 = vld [vmem:[#allocation2 + $0x388] sm:$0xff]
        %v1186 = vld [vmem:[#allocation2 + $0x390] sm:$0xff]
        %v1187 = vld [vmem:[#allocation2 + $0x398] sm:$0xff]
        %v1188 = vld [vmem:[#allocation2 + $0x3a0] sm:$0xff]
        %v1189 = vld [vmem:[#allocation2 + $0x3a8] sm:$0xff]
        %v1190 = vld [vmem:[#allocation2 + $0x3b0] sm:$0xff]
        %v1191 = vld [vmem:[#allocation2 + $0x3b8] sm:$0xff]
        %1192 = vmatprep.subr.mxu0 %v1161
        %1193 = vmatpush1.msra.mxu0 %v1160
        %1194 = vmatprep.subr.mxu0 %v1163
        %1195 = vmatpush1.msra.mxu0 %v1162
        %1196 = vmatprep.subr.mxu0 %v1165
        %1197 = vmatpush1.msra.mxu0 %v1164
        %1198 = vmatprep.subr.mxu0 %v1167
        %1199 = vmatpush1.msra.mxu0 %v1166
        %1200 = vmatprep.subr.mxu0 %v1169
        %1201 = vmatpush1.msra.mxu0 %v1168
        %1202 = vmatprep.subr.mxu0 %v1171
        %1203 = vmatpush1.msra.mxu0 %v1170
        %1204 = vmatprep.subr.mxu0 %v1173
        %1205 = vmatpush1.msra.mxu0 %v1172
        %1206 = vmatprep.subr.mxu0 %v1175
        %1207 = vmatpush1.msra.mxu0 %v1174
        %1208 = vmatprep.subr.mxu0 %v1177
        %1209 = vmatpush1.msra.mxu0 %v1176
        %1210 = vmatprep.subr.mxu0 %v1179
        %1211 = vmatpush1.msra.mxu0 %v1178
        %1212 = vmatprep.subr.mxu0 %v1181
        %1213 = vmatpush1.msra.mxu0 %v1180
        %1214 = vmatprep.subr.mxu0 %v1183
        %1215 = vmatpush1.msra.mxu0 %v1182
        %1216 = vmatprep.subr.mxu0 %v1185
        %1217 = vmatpush1.msra.mxu0 %v1184
        %1218 = vmatprep.subr.mxu0 %v1187
        %1219 = vmatpush1.msra.mxu0 %v1186
        %1220 = vmatprep.subr.mxu0 %v1189
        %1221 = vmatpush1.msra.mxu0 %v1188
        %1222 = vmatprep.subr.mxu0 %v1191
        %1223 = vmatpush1.msra.mxu0 %v1190
        %1224 = vmatprep.subr.mxu0 0.0
        %1225 = vmatpush1.msra.mxu0 0.0
        %1226 = vmatprep.subr.mxu0 0.0
        %1227 = vmatpush1.msra.mxu0 0.0
        %1228 = vmatprep.subr.mxu0 0.0
        %1229 = vmatpush1.msra.mxu0 0.0
        %1230 = vmatprep.subr.mxu0 0.0
        %1231 = vmatpush1.msra.mxu0 0.0
        %1232 = vmatprep.subr.mxu0 0.0
        %1233 = vmatpush1.msra.mxu0 0.0
        %1234 = vmatprep.subr.mxu0 0.0
        %1235 = vmatpush1.msra.mxu0 0.0
        %1236 = vmatprep.subr.mxu0 0.0
        %1237 = vmatpush1.msra.mxu0 0.0
        %1238 = vmatprep.subr.mxu0 0.0
        %1239 = vmatpush1.msra.mxu0 0.0
        %1240 = vmatprep.subr.mxu0 0.0
        %1241 = vmatpush1.msra.mxu0 0.0
        %1242 = vmatprep.subr.mxu0 0.0
        %1243 = vmatpush1.msra.mxu0 0.0
        %1244 = vmatprep.subr.mxu0 0.0
        %1245 = vmatpush1.msra.mxu0 0.0
        %1246 = vmatprep.subr.mxu0 0.0
        %1247 = vmatpush1.msra.mxu0 0.0
        %1248 = vmatprep.subr.mxu0 0.0
        %1249 = vmatpush1.msra.mxu0 0.0
        %1250 = vmatprep.subr.mxu0 0.0
        %1251 = vmatpush1.msra.mxu0 0.0
        %1252 = vmatprep.subr.mxu0 0.0
        %1253 = vmatpush1.msra.mxu0 0.0
        %1254 = vmatprep.subr.mxu0 0.0
        %1255 = vmatpush1.msra.mxu0 0.0
        %1256 = vmatprep.mubr.f32.mxu0 0.0
        %1257 = vmatmul.mubr.f32.gmra.mrb[0].mxu0 %v729
        %v1258 = vpop.f32.mrb[0].mxu0
        %v1259 = vadd.f32 0.0, %v1258
        %v1260 = vpop.f32.mrb[0].mxu0
        %v1261 = vadd.f32 0.0, %v1260
        %1262 = vmatprep.mubr.f32.mxu0 0.0
        %1263 = vmatmul.mubr.f32.gmra.mrb[0].mxu0 %v730
        %v1264 = vpop.f32.mrb[0].mxu0
        %v1265 = vadd.f32 0.0, %v1264
        %v1266 = vpop.f32.mrb[0].mxu0
        %v1267 = vadd.f32 0.0, %v1266
        %1268 = vdwg.mxu0
        %v1269 = vld [vmem:[%s1 + $0x70] sm:$0xff]
        %v1270 = vld [vmem:[%s1 + $0x78] sm:$0xff]
        %v1271 = vld [vmem:[%s1 + $0x80] sm:$0xff]
        %v1272 = vld [vmem:[%s1 + $0x88] sm:$0xff]
        %v1274 = vsel %vm957, %v1269, 0
        %v1277 = vsel %vm957, %v1270, 0
        %v1280 = vsel %vm957, %v1271, 0
        %v1283 = vsel %vm957, %v1272, 0
        %1285 = vmatprep.subr.mxu0 %v1261
        %1286 = vmatpush1.msra.mxu0 %v1259
        %1287 = vmatprep.subr.mxu0 %v1267
        %1288 = vmatpush1.msra.mxu0 %v1265
        %1289 = vmatprep.subr.mxu0 0.0
        %1290 = vmatpush1.msra.mxu0 0.0
        %1291 = vmatprep.subr.mxu0 0.0
        %1292 = vmatpush1.msra.mxu0 0.0
        %1293 = vmatprep.subr.mxu0 0.0
        %1294 = vmatpush1.msra.mxu0 0.0
        %1295 = vmatprep.subr.mxu0 0.0
        %1296 = vmatpush1.msra.mxu0 0.0
        %1297 = vmatprep.subr.mxu0 0.0
        %1298 = vmatpush1.msra.mxu0 0.0
        %1299 = vmatprep.subr.mxu0 0.0
        %1300 = vmatpush1.msra.mxu0 0.0
        %1301 = vmatprep.subr.mxu0 0.0
        %1302 = vmatpush1.msra.mxu0 0.0
        %1303 = vmatprep.subr.mxu0 0.0
        %1304 = vmatpush1.msra.mxu0 0.0
        %1305 = vmatprep.subr.mxu0 0.0
        %1306 = vmatpush1.msra.mxu0 0.0
        %1307 = vmatprep.subr.mxu0 0.0
        %1308 = vmatpush1.msra.mxu0 0.0
        %1309 = vmatprep.subr.mxu0 0.0
        %1310 = vmatpush1.msra.mxu0 0.0
        %1311 = vmatprep.subr.mxu0 0.0
        %1312 = vmatpush1.msra.mxu0 0.0
        %1313 = vmatprep.subr.mxu0 0.0
        %1314 = vmatpush1.msra.mxu0 0.0
        %1315 = vmatprep.subr.mxu0 0.0
        %1316 = vmatpush1.msra.mxu0 0.0
        %1317 = vmatprep.subr.mxu0 0.0
        %1318 = vmatpush1.msra.mxu0 0.0
        %1319 = vmatprep.subr.mxu0 0.0
        %1320 = vmatpush1.msra.mxu0 0.0
        %1321 = vmatprep.subr.mxu0 0.0
        %1322 = vmatpush1.msra.mxu0 0.0
        %1323 = vmatprep.subr.mxu0 0.0
        %1324 = vmatpush1.msra.mxu0 0.0
        %1325 = vmatprep.subr.mxu0 0.0
        %1326 = vmatpush1.msra.mxu0 0.0
        %1327 = vmatprep.subr.mxu0 0.0
        %1328 = vmatpush1.msra.mxu0 0.0
        %1329 = vmatprep.subr.mxu0 0.0
        %1330 = vmatpush1.msra.mxu0 0.0
        %1331 = vmatprep.subr.mxu0 0.0
        %1332 = vmatpush1.msra.mxu0 0.0
        %1333 = vmatprep.subr.mxu0 0.0
        %1334 = vmatpush1.msra.mxu0 0.0
        %1335 = vmatprep.subr.mxu0 0.0
        %1336 = vmatpush1.msra.mxu0 0.0
        %1337 = vmatprep.subr.mxu0 0.0
        %1338 = vmatpush1.msra.mxu0 0.0
        %1339 = vmatprep.subr.mxu0 0.0
        %1340 = vmatpush1.msra.mxu0 0.0
        %1341 = vmatprep.subr.mxu0 0.0
        %1342 = vmatpush1.msra.mxu0 0.0
        %1343 = vmatprep.subr.mxu0 0.0
        %1344 = vmatpush1.msra.mxu0 0.0
        %1345 = vmatprep.subr.mxu0 0.0
        %1346 = vmatpush1.msra.mxu0 0.0
        %1347 = vmatprep.subr.mxu0 0.0
        %1348 = vmatpush1.msra.mxu0 0.0
        %1349 = vmatprep.mubr.f32.mxu0 0.0
        %1350 = vmatmul.mubr.f32.gmra.mrb[0].mxu0 %v1274
        %v1351 = vpop.f32.mrb[0].mxu0
        %v1352 = vadd.f32 0.0, %v1351
        %v1353 = vpop.f32.mrb[0].mxu0
        %v1354 = vadd.f32 0.0, %v1353
        %1355 = vmatprep.mubr.f32.mxu0 0.0
        %1356 = vmatmul.mubr.f32.gmra.mrb[0].mxu0 %v1277
        %v1357 = vpop.f32.mrb[0].mxu0
        %v1358 = vadd.f32 0.0, %v1357
        %v1359 = vpop.f32.mrb[0].mxu0
        %v1360 = vadd.f32 0.0, %v1359
        %1361 = vmatprep.mubr.f32.mxu0 0.0
        %1362 = vmatmul.mubr.f32.gmra.mrb[0].mxu0 %v1280
        %v1363 = vpop.f32.mrb[0].mxu0
        %v1364 = vadd.f32 0.0, %v1363
        %v1365 = vpop.f32.mrb[0].mxu0
        %v1366 = vadd.f32 0.0, %v1365
        %1367 = vmatprep.mubr.f32.mxu0 0.0
        %1368 = vmatmul.mubr.f32.gmra.mrb[0].mxu0 %v1283
        %v1369 = vpop.f32.mrb[0].mxu0
        %v1370 = vadd.f32 0.0, %v1369
        %v1371 = vpop.f32.mrb[0].mxu0
        %v1372 = vadd.f32 0.0, %v1371
        %1373 = vdwg.mxu0
        %v1374 = vadd.f32 %v1138, %v1352
        %v1375 = vadd.f32 %v1140, %v1354
        %v1376 = vadd.f32 %v1144, %v1358
        %v1377 = vadd.f32 %v1146, %v1360
        %v1378 = vadd.f32 %v1150, %v1364
        %v1379 = vadd.f32 %v1152, %v1366
        %v1380 = vadd.f32 %v1156, %v1370
        %v1381 = vadd.f32 %v1158, %v1372
        %s1382 = scalar_lea.vmem [#allocation4], 16
        %v1383 = vld [vmem:[%s1382] ss:$8 sm:$0x3]
        %v1385 = vlaneseq
        %v1386 = vshrl.u32 %v1385, 7
        %v1387 = vsub.s32 0, %v1386
        %v1388 = vrot.slane %v1383, %v1387
        %v1389 = vlaneseq
        %v1390 = vshrl.u32 %v1389, 7
        %v1391 = vsub.s32 1, %v1390
        %v1392 = vrot.slane %v1383, %v1391
        %v1395 = vadd.f32 %v1374, %v1388
        %v1396 = vadd.f32 %v1375, %v1392
        %v1397 = vadd.f32 %v1376, %v1388
        %v1398 = vadd.f32 %v1377, %v1392
        %v1399 = vadd.f32 %v1378, %v1388
        %v1400 = vadd.f32 %v1379, %v1392
        %v1401 = vadd.f32 %v1380, %v1388
        %v1402 = vadd.f32 %v1381, %v1392
        %v1403 = vmax.f32 %v1395, 0.0
        %v1404 = vmax.f32 %v1396, 0.0
        %v1405 = vmax.f32 %v1397, 0.0
        %v1406 = vmax.f32 %v1398, 0.0
        %v1407 = vmax.f32 %v1399, 0.0
        %v1408 = vmax.f32 %v1400, 0.0
        %v1409 = vmax.f32 %v1401, 0.0
        %v1410 = vmax.f32 %v1402, 0.0
        %v1411 = vld [vmem:[#allocation2 + $0x3c0] sm:$0xff]
        %v1412 = vld [vmem:[#allocation2 + $0x3c8] sm:$0xff]
        %v1413 = vld [vmem:[#allocation2 + $0x3d0] sm:$0xff]
        %v1414 = vld [vmem:[#allocation2 + $0x3d8] sm:$0xff]
        %v1415 = vld [vmem:[#allocation2 + $0x3e0] sm:$0xff]
        %v1416 = vld [vmem:[#allocation2 + $0x3e8] sm:$0xff]
        %v1417 = vld [vmem:[#allocation2 + $0x3f0] sm:$0xff]
        %v1418 = vld [vmem:[#allocation2 + $0x3f8] sm:$0xff]
        %v1419 = vld [vmem:[#allocation2 + $0x400] sm:$0xff]
        %v1420 = vld [vmem:[#allocation2 + $0x408] sm:$0xff]
        %v1421 = vld [vmem:[#allocation2 + $0x410] sm:$0xff]
        %v1422 = vld [vmem:[#allocation2 + $0x418] sm:$0xff]
        %v1423 = vld [vmem:[#allocation2 + $0x420] sm:$0xff]
        %v1424 = vld [vmem:[#allocation2 + $0x428] sm:$0xff]
        %v1425 = vld [vmem:[#allocation2 + $0x430] sm:$0xff]
        %v1426 = vld [vmem:[#allocation2 + $0x438] sm:$0xff]
        %v1427 = vld [vmem:[#allocation2 + $0x440] sm:$0xff]
        %v1428 = vld [vmem:[#allocation2 + $0x448] sm:$0xff]
        %v1429 = vld [vmem:[#allocation2 + $0x450] sm:$0xff]
        %v1430 = vld [vmem:[#allocation2 + $0x458] sm:$0xff]
        %v1431 = vld [vmem:[#allocation2 + $0x460] sm:$0xff]
        %v1432 = vld [vmem:[#allocation2 + $0x468] sm:$0xff]
        %v1433 = vld [vmem:[#allocation2 + $0x470] sm:$0xff]
        %v1434 = vld [vmem:[#allocation2 + $0x478] sm:$0xff]
        %v1435 = vld [vmem:[#allocation2 + $0x480] sm:$0xff]
        %v1436 = vld [vmem:[#allocation2 + $0x488] sm:$0xff]
        %v1437 = vld [vmem:[#allocation2 + $0x490] sm:$0xff]
        %v1438 = vld [vmem:[#allocation2 + $0x498] sm:$0xff]
        %v1439 = vld [vmem:[#allocation2 + $0x4a0] sm:$0xff]
        %v1440 = vld [vmem:[#allocation2 + $0x4a8] sm:$0xff]
        %v1441 = vld [vmem:[#allocation2 + $0x4b0] sm:$0xff]
        %v1442 = vld [vmem:[#allocation2 + $0x4b8] sm:$0xff]
        %v1443 = vld [vmem:[#allocation2 + $0x4c0] sm:$0xff]
        %v1444 = vld [vmem:[#allocation2 + $0x4c8] sm:$0xff]
        %v1445 = vld [vmem:[#allocation2 + $0x4d0] sm:$0xff]
        %v1446 = vld [vmem:[#allocation2 + $0x4d8] sm:$0xff]
        %v1447 = vld [vmem:[#allocation2 + $0x4e0] sm:$0xff]
        %v1448 = vld [vmem:[#allocation2 + $0x4e8] sm:$0xff]
        %v1449 = vld [vmem:[#allocation2 + $0x4f0] sm:$0xff]
        %v1450 = vld [vmem:[#allocation2 + $0x4f8] sm:$0xff]
        %v1451 = vld [vmem:[#allocation2 + $0x500] sm:$0xff]
        %v1452 = vld [vmem:[#allocation2 + $0x508] sm:$0xff]
        %v1453 = vld [vmem:[#allocation2 + $0x510] sm:$0xff]
        %v1454 = vld [vmem:[#allocation2 + $0x518] sm:$0xff]
        %v1455 = vld [vmem:[#allocation2 + $0x520] sm:$0xff]
        %v1456 = vld [vmem:[#allocation2 + $0x528] sm:$0xff]
        %v1457 = vld [vmem:[#allocation2 + $0x530] sm:$0xff]
        %v1458 = vld [vmem:[#allocation2 + $0x538] sm:$0xff]
        %v1459 = vld [vmem:[#allocation2 + $0x540] sm:$0xff]
        %v1460 = vld [vmem:[#allocation2 + $0x548] sm:$0xff]
        %v1461 = vld [vmem:[#allocation2 + $0x550] sm:$0xff]
        %v1462 = vld [vmem:[#allocation2 + $0x558] sm:$0xff]
        %v1463 = vld [vmem:[#allocation2 + $0x560] sm:$0xff]
        %v1464 = vld [vmem:[#allocation2 + $0x568] sm:$0xff]
        %v1465 = vld [vmem:[#allocation2 + $0x570] sm:$0xff]
        %v1466 = vld [vmem:[#allocation2 + $0x578] sm:$0xff]
        %v1467 = vld [vmem:[#allocation2 + $0x580] sm:$0xff]
        %v1468 = vld [vmem:[#allocation2 + $0x588] sm:$0xff]
        %v1469 = vld [vmem:[#allocation2 + $0x590] sm:$0xff]
        %v1470 = vld [vmem:[#allocation2 + $0x598] sm:$0xff]
        %v1471 = vld [vmem:[#allocation2 + $0x5a0] sm:$0xff]
        %v1472 = vld [vmem:[#allocation2 + $0x5a8] sm:$0xff]
        %v1473 = vld [vmem:[#allocation2 + $0x5b0] sm:$0xff]
        %v1474 = vld [vmem:[#allocation2 + $0x5b8] sm:$0xff]
        %1475 = vmatprep.subr.mxu0 %v1412
        %1476 = vmatpush1.msra.mxu0 %v1411
        %1477 = vmatprep.subr.mxu0 %v1414
        %1478 = vmatpush1.msra.mxu0 %v1413
        %1479 = vmatprep.subr.mxu0 %v1416
        %1480 = vmatpush1.msra.mxu0 %v1415
        %1481 = vmatprep.subr.mxu0 %v1418
        %1482 = vmatpush1.msra.mxu0 %v1417
        %1483 = vmatprep.subr.mxu0 %v1420
        %1484 = vmatpush1.msra.mxu0 %v1419
        %1485 = vmatprep.subr.mxu0 %v1422
        %1486 = vmatpush1.msra.mxu0 %v1421
        %1487 = vmatprep.subr.mxu0 %v1424
        %1488 = vmatpush1.msra.mxu0 %v1423
        %1489 = vmatprep.subr.mxu0 %v1426
        %1490 = vmatpush1.msra.mxu0 %v1425
        %1491 = vmatprep.subr.mxu0 %v1428
        %1492 = vmatpush1.msra.mxu0 %v1427
        %1493 = vmatprep.subr.mxu0 %v1430
        %1494 = vmatpush1.msra.mxu0 %v1429
        %1495 = vmatprep.subr.mxu0 %v1432
        %1496 = vmatpush1.msra.mxu0 %v1431
        %1497 = vmatprep.subr.mxu0 %v1434
        %1498 = vmatpush1.msra.mxu0 %v1433
        %1499 = vmatprep.subr.mxu0 %v1436
        %1500 = vmatpush1.msra.mxu0 %v1435
        %1501 = vmatprep.subr.mxu0 %v1438
        %1502 = vmatpush1.msra.mxu0 %v1437
        %1503 = vmatprep.subr.mxu0 %v1440
        %1504 = vmatpush1.msra.mxu0 %v1439
        %1505 = vmatprep.subr.mxu0 %v1442
        %1506 = vmatpush1.msra.mxu0 %v1441
        %1507 = vmatprep.subr.mxu0 %v1444
        %1508 = vmatpush1.msra.mxu0 %v1443
        %1509 = vmatprep.subr.mxu0 %v1446
        %1510 = vmatpush1.msra.mxu0 %v1445
        %1511 = vmatprep.subr.mxu0 %v1448
        %1512 = vmatpush1.msra.mxu0 %v1447
        %1513 = vmatprep.subr.mxu0 %v1450
        %1514 = vmatpush1.msra.mxu0 %v1449
        %1515 = vmatprep.subr.mxu0 %v1452
        %1516 = vmatpush1.msra.mxu0 %v1451
        %1517 = vmatprep.subr.mxu0 %v1454
        %1518 = vmatpush1.msra.mxu0 %v1453
        %1519 = vmatprep.subr.mxu0 %v1456
        %1520 = vmatpush1.msra.mxu0 %v1455
        %1521 = vmatprep.subr.mxu0 %v1458
        %1522 = vmatpush1.msra.mxu0 %v1457
        %1523 = vmatprep.subr.mxu0 %v1460
        %1524 = vmatpush1.msra.mxu0 %v1459
        %1525 = vmatprep.subr.mxu0 %v1462
        %1526 = vmatpush1.msra.mxu0 %v1461
        %1527 = vmatprep.subr.mxu0 %v1464
        %1528 = vmatpush1.msra.mxu0 %v1463
        %1529 = vmatprep.subr.mxu0 %v1466
        %1530 = vmatpush1.msra.mxu0 %v1465
        %1531 = vmatprep.subr.mxu0 %v1468
        %1532 = vmatpush1.msra.mxu0 %v1467
        %1533 = vmatprep.subr.mxu0 %v1470
        %1534 = vmatpush1.msra.mxu0 %v1469
        %1535 = vmatprep.subr.mxu0 %v1472
        %1536 = vmatpush1.msra.mxu0 %v1471
        %1537 = vmatprep.subr.mxu0 %v1474
        %1538 = vmatpush1.msra.mxu0 %v1473
        %1539 = vmatprep.mubr.f32.mxu0 %v1404
        %1540 = vmatmul.mubr.f32.gmra.mrb[0].mxu0 %v1403
        %v1541 = vpop.f32.mrb[0].mxu0
        %v1542 = vadd.f32 0.0, %v1541
        %v1543 = vpop.f32.mrb[0].mxu0
        %v1544 = vadd.f32 0.0, %v1543
        %1545 = vmatprep.mubr.f32.mxu0 %v1406
        %1546 = vmatmul.mubr.f32.gmra.mrb[0].mxu0 %v1405
        %v1547 = vpop.f32.mrb[0].mxu0
        %v1548 = vadd.f32 0.0, %v1547
        %v1549 = vpop.f32.mrb[0].mxu0
        %v1550 = vadd.f32 0.0, %v1549
        %1551 = vmatprep.mubr.f32.mxu0 %v1408
        %1552 = vmatmul.mubr.f32.gmra.mrb[0].mxu0 %v1407
        %v1553 = vpop.f32.mrb[0].mxu0
        %v1554 = vadd.f32 0.0, %v1553
        %v1555 = vpop.f32.mrb[0].mxu0
        %v1556 = vadd.f32 0.0, %v1555
        %1557 = vmatprep.mubr.f32.mxu0 %v1410
        %1558 = vmatmul.mubr.f32.gmra.mrb[0].mxu0 %v1409
        %v1559 = vpop.f32.mrb[0].mxu0
        %v1560 = vadd.f32 0.0, %v1559
        %v1561 = vpop.f32.mrb[0].mxu0
        %v1562 = vadd.f32 0.0, %v1561
        %1563 = vdwg.mxu0
        %v1564 = vld [vmem:[%s1 + $0x90] sm:$0xff]
        %v1565 = vld [vmem:[%s1 + $0x98] sm:$0xff]
        %v1566 = vld [vmem:[%s1 + $0xa0] sm:$0xff]
        %v1567 = vld [vmem:[%s1 + $0xa8] sm:$0xff]
        %v1568 = vld [vmem:[%s1 + $0xb0] sm:$0xff]
        %v1569 = vld [vmem:[%s1 + $0xb8] sm:$0xff]
        %v1570 = vld [vmem:[%s1 + $0xc0] sm:$0xff]
        %v1571 = vld [vmem:[%s1 + $0xc8] sm:$0xff]
        %v1572 = vld [vmem:[#allocation2 + $0x5c0] sm:$0xff]
        %v1573 = vld [vmem:[#allocation2 + $0x5c8] sm:$0xff]
        %v1574 = vld [vmem:[#allocation2 + $0x5d0] sm:$0xff]
        %v1575 = vld [vmem:[#allocation2 + $0x5d8] sm:$0xff]
        %v1576 = vld [vmem:[#allocation2 + $0x5e0] sm:$0xff]
        %v1577 = vld [vmem:[#allocation2 + $0x5e8] sm:$0xff]
        %v1578 = vld [vmem:[#allocation2 + $0x5f0] sm:$0xff]
        %v1579 = vld [vmem:[#allocation2 + $0x5f8] sm:$0xff]
        %v1580 = vld [vmem:[#allocation2 + $0x600] sm:$0xff]
        %v1581 = vld [vmem:[#allocation2 + $0x608] sm:$0xff]
        %v1582 = vld [vmem:[#allocation2 + $0x610] sm:$0xff]
        %v1583 = vld [vmem:[#allocation2 + $0x618] sm:$0xff]
        %v1584 = vld [vmem:[#allocation2 + $0x620] sm:$0xff]
        %v1585 = vld [vmem:[#allocation2 + $0x628] sm:$0xff]
        %v1586 = vld [vmem:[#allocation2 + $0x630] sm:$0xff]
        %v1587 = vld [vmem:[#allocation2 + $0x638] sm:$0xff]
        %v1588 = vld [vmem:[#allocation2 + $0x640] sm:$0xff]
        %v1589 = vld [vmem:[#allocation2 + $0x648] sm:$0xff]
        %v1590 = vld [vmem:[#allocation2 + $0x650] sm:$0xff]
        %v1591 = vld [vmem:[#allocation2 + $0x658] sm:$0xff]
        %v1592 = vld [vmem:[#allocation2 + $0x660] sm:$0xff]
        %v1593 = vld [vmem:[#allocation2 + $0x668] sm:$0xff]
        %v1594 = vld [vmem:[#allocation2 + $0x670] sm:$0xff]
        %v1595 = vld [vmem:[#allocation2 + $0x678] sm:$0xff]
        %v1596 = vld [vmem:[#allocation2 + $0x680] sm:$0xff]
        %v1597 = vld [vmem:[#allocation2 + $0x688] sm:$0xff]
        %v1598 = vld [vmem:[#allocation2 + $0x690] sm:$0xff]
        %v1599 = vld [vmem:[#allocation2 + $0x698] sm:$0xff]
        %v1600 = vld [vmem:[#allocation2 + $0x6a0] sm:$0xff]
        %v1601 = vld [vmem:[#allocation2 + $0x6a8] sm:$0xff]
        %v1602 = vld [vmem:[#allocation2 + $0x6b0] sm:$0xff]
        %v1603 = vld [vmem:[#allocation2 + $0x6b8] sm:$0xff]
        %v1604 = vld [vmem:[#allocation2 + $0x6c0] sm:$0xff]
        %v1605 = vld [vmem:[#allocation2 + $0x6c8] sm:$0xff]
        %v1606 = vld [vmem:[#allocation2 + $0x6d0] sm:$0xff]
        %v1607 = vld [vmem:[#allocation2 + $0x6d8] sm:$0xff]
        %v1608 = vld [vmem:[#allocation2 + $0x6e0] sm:$0xff]
        %v1609 = vld [vmem:[#allocation2 + $0x6e8] sm:$0xff]
        %v1610 = vld [vmem:[#allocation2 + $0x6f0] sm:$0xff]
        %v1611 = vld [vmem:[#allocation2 + $0x6f8] sm:$0xff]
        %v1612 = vld [vmem:[#allocation2 + $0x700] sm:$0xff]
        %v1613 = vld [vmem:[#allocation2 + $0x708] sm:$0xff]
        %v1614 = vld [vmem:[#allocation2 + $0x710] sm:$0xff]
        %v1615 = vld [vmem:[#allocation2 + $0x718] sm:$0xff]
        %v1616 = vld [vmem:[#allocation2 + $0x720] sm:$0xff]
        %v1617 = vld [vmem:[#allocation2 + $0x728] sm:$0xff]
        %v1618 = vld [vmem:[#allocation2 + $0x730] sm:$0xff]
        %v1619 = vld [vmem:[#allocation2 + $0x738] sm:$0xff]
        %v1620 = vld [vmem:[#allocation2 + $0x740] sm:$0xff]
        %v1621 = vld [vmem:[#allocation2 + $0x748] sm:$0xff]
        %v1622 = vld [vmem:[#allocation2 + $0x750] sm:$0xff]
        %v1623 = vld [vmem:[#allocation2 + $0x758] sm:$0xff]
        %v1624 = vld [vmem:[#allocation2 + $0x760] sm:$0xff]
        %v1625 = vld [vmem:[#allocation2 + $0x768] sm:$0xff]
        %v1626 = vld [vmem:[#allocation2 + $0x770] sm:$0xff]
        %v1627 = vld [vmem:[#allocation2 + $0x778] sm:$0xff]
        %v1628 = vld [vmem:[#allocation2 + $0x780] sm:$0xff]
        %v1629 = vld [vmem:[#allocation2 + $0x788] sm:$0xff]
        %v1630 = vld [vmem:[#allocation2 + $0x790] sm:$0xff]
        %v1631 = vld [vmem:[#allocation2 + $0x798] sm:$0xff]
        %v1632 = vld [vmem:[#allocation2 + $0x7a0] sm:$0xff]
        %v1633 = vld [vmem:[#allocation2 + $0x7a8] sm:$0xff]
        %v1634 = vld [vmem:[#allocation2 + $0x7b0] sm:$0xff]
        %v1635 = vld [vmem:[#allocation2 + $0x7b8] sm:$0xff]
        %1636 = vmatprep.subr.mxu0 %v1573
        %1637 = vmatpush1.msra.mxu0 %v1572
        %1638 = vmatprep.subr.mxu0 %v1575
        %1639 = vmatpush1.msra.mxu0 %v1574
        %1640 = vmatprep.subr.mxu0 %v1577
        %1641 = vmatpush1.msra.mxu0 %v1576
        %1642 = vmatprep.subr.mxu0 %v1579
        %1643 = vmatpush1.msra.mxu0 %v1578
        %1644 = vmatprep.subr.mxu0 %v1581
        %1645 = vmatpush1.msra.mxu0 %v1580
        %1646 = vmatprep.subr.mxu0 %v1583
        %1647 = vmatpush1.msra.mxu0 %v1582
        %1648 = vmatprep.subr.mxu0 %v1585
        %1649 = vmatpush1.msra.mxu0 %v1584
        %1650 = vmatprep.subr.mxu0 %v1587
        %1651 = vmatpush1.msra.mxu0 %v1586
        %1652 = vmatprep.subr.mxu0 %v1589
        %1653 = vmatpush1.msra.mxu0 %v1588
        %1654 = vmatprep.subr.mxu0 %v1591
        %1655 = vmatpush1.msra.mxu0 %v1590
        %1656 = vmatprep.subr.mxu0 %v1593
        %1657 = vmatpush1.msra.mxu0 %v1592
        %1658 = vmatprep.subr.mxu0 %v1595
        %1659 = vmatpush1.msra.mxu0 %v1594
        %1660 = vmatprep.subr.mxu0 %v1597
        %1661 = vmatpush1.msra.mxu0 %v1596
        %1662 = vmatprep.subr.mxu0 %v1599
        %1663 = vmatpush1.msra.mxu0 %v1598
        %1664 = vmatprep.subr.mxu0 %v1601
        %1665 = vmatpush1.msra.mxu0 %v1600
        %1666 = vmatprep.subr.mxu0 %v1603
        %1667 = vmatpush1.msra.mxu0 %v1602
        %1668 = vmatprep.subr.mxu0 %v1605
        %1669 = vmatpush1.msra.mxu0 %v1604
        %1670 = vmatprep.subr.mxu0 %v1607
        %1671 = vmatpush1.msra.mxu0 %v1606
        %1672 = vmatprep.subr.mxu0 %v1609
        %1673 = vmatpush1.msra.mxu0 %v1608
        %1674 = vmatprep.subr.mxu0 %v1611
        %1675 = vmatpush1.msra.mxu0 %v1610
        %1676 = vmatprep.subr.mxu0 %v1613
        %1677 = vmatpush1.msra.mxu0 %v1612
        %1678 = vmatprep.subr.mxu0 %v1615
        %1679 = vmatpush1.msra.mxu0 %v1614
        %1680 = vmatprep.subr.mxu0 %v1617
        %1681 = vmatpush1.msra.mxu0 %v1616
        %1682 = vmatprep.subr.mxu0 %v1619
        %1683 = vmatpush1.msra.mxu0 %v1618
        %1684 = vmatprep.subr.mxu0 %v1621
        %1685 = vmatpush1.msra.mxu0 %v1620
        %1686 = vmatprep.subr.mxu0 %v1623
        %1687 = vmatpush1.msra.mxu0 %v1622
        %1688 = vmatprep.subr.mxu0 %v1625
        %1689 = vmatpush1.msra.mxu0 %v1624
        %1690 = vmatprep.subr.mxu0 %v1627
        %1691 = vmatpush1.msra.mxu0 %v1626
        %1692 = vmatprep.subr.mxu0 %v1629
        %1693 = vmatpush1.msra.mxu0 %v1628
        %1694 = vmatprep.subr.mxu0 %v1631
        %1695 = vmatpush1.msra.mxu0 %v1630
        %1696 = vmatprep.subr.mxu0 %v1633
        %1697 = vmatpush1.msra.mxu0 %v1632
        %1698 = vmatprep.subr.mxu0 %v1635
        %1699 = vmatpush1.msra.mxu0 %v1634
        %1700 = vmatprep.mubr.f32.mxu0 %v1404
        %1701 = vmatmul.mubr.f32.gmra.mrb[0].mxu0 %v1403
        %v1702 = vpop.f32.mrb[0].mxu0
        %v1703 = vadd.f32 0.0, %v1702
        %v1704 = vpop.f32.mrb[0].mxu0
        %v1705 = vadd.f32 0.0, %v1704
        %1706 = vmatprep.mubr.f32.mxu0 %v1406
        %1707 = vmatmul.mubr.f32.gmra.mrb[0].mxu0 %v1405
        %v1708 = vpop.f32.mrb[0].mxu0
        %v1709 = vadd.f32 0.0, %v1708
        %v1710 = vpop.f32.mrb[0].mxu0
        %v1711 = vadd.f32 0.0, %v1710
        %1712 = vmatprep.mubr.f32.mxu0 %v1408
        %1713 = vmatmul.mubr.f32.gmra.mrb[0].mxu0 %v1407
        %v1714 = vpop.f32.mrb[0].mxu0
        %v1715 = vadd.f32 0.0, %v1714
        %v1716 = vpop.f32.mrb[0].mxu0
        %v1717 = vadd.f32 0.0, %v1716
        %1718 = vmatprep.mubr.f32.mxu0 %v1410
        %1719 = vmatmul.mubr.f32.gmra.mrb[0].mxu0 %v1409
        %v1720 = vpop.f32.mrb[0].mxu0
        %v1721 = vadd.f32 0.0, %v1720
        %v1722 = vpop.f32.mrb[0].mxu0
        %v1723 = vadd.f32 0.0, %v1722
        %1724 = vdwg.mxu0
        %v1725 = vld [vmem:[%s1 + $0xd0] sm:$0xff]
        %v1726 = vld [vmem:[%s1 + $0xd8] sm:$0xff]
        %v1727 = vld [vmem:[%s1 + $0xe0] sm:$0xff]
        %v1728 = vld [vmem:[%s1 + $0xe8] sm:$0xff]
        %v1729 = vld [vmem:[%s1 + $0xf0] sm:$0xff]
        %v1730 = vld [vmem:[%s1 + $0xf8] sm:$0xff]
        %v1731 = vld [vmem:[%s1 + $0x100] sm:$0xff]
        %v1732 = vld [vmem:[%s1 + $0x108] sm:$0xff]
        %v1734 = vsel %vm235, %v1725, 0
        %v1737 = vsel %vm235, %v1726, 0
        %v1740 = vsel %vm235, %v1727, 0
        %v1743 = vsel %vm235, %v1728, 0
        %v1746 = vsel %vm235, %v1729, 0
        %v1749 = vsel %vm235, %v1730, 0
        %v1752 = vsel %vm235, %v1731, 0
        %v1755 = vsel %vm235, %v1732, 0
        %1757 = vmatprep.subr.mxu0 %v1705
        %1758 = vmatpush1.msra.mxu0 %v1703
        %1759 = vmatprep.subr.mxu0 %v1711
        %1760 = vmatpush1.msra.mxu0 %v1709
        %1761 = vmatprep.subr.mxu0 %v1717
        %1762 = vmatpush1.msra.mxu0 %v1715
        %1763 = vmatprep.subr.mxu0 %v1723
        %1764 = vmatpush1.msra.mxu0 %v1721
        %1765 = vmatprep.subr.mxu0 0.0
        %1766 = vmatpush1.msra.mxu0 0.0
        %1767 = vmatprep.subr.mxu0 0.0
        %1768 = vmatpush1.msra.mxu0 0.0
        %1769 = vmatprep.subr.mxu0 0.0
        %1770 = vmatpush1.msra.mxu0 0.0
        %1771 = vmatprep.subr.mxu0 0.0
        %1772 = vmatpush1.msra.mxu0 0.0
        %1773 = vmatprep.subr.mxu0 0.0
        %1774 = vmatpush1.msra.mxu0 0.0
        %1775 = vmatprep.subr.mxu0 0.0
        %1776 = vmatpush1.msra.mxu0 0.0
        %1777 = vmatprep.subr.mxu0 0.0
        %1778 = vmatpush1.msra.mxu0 0.0
        %1779 = vmatprep.subr.mxu0 0.0
        %1780 = vmatpush1.msra.mxu0 0.0
        %1781 = vmatprep.subr.mxu0 0.0
        %1782 = vmatpush1.msra.mxu0 0.0
        %1783 = vmatprep.subr.mxu0 0.0
        %1784 = vmatpush1.msra.mxu0 0.0
        %1785 = vmatprep.subr.mxu0 0.0
        %1786 = vmatpush1.msra.mxu0 0.0
        %1787 = vmatprep.subr.mxu0 0.0
        %1788 = vmatpush1.msra.mxu0 0.0
        %1789 = vmatprep.subr.mxu0 0.0
        %1790 = vmatpush1.msra.mxu0 0.0
        %1791 = vmatprep.subr.mxu0 0.0
        %1792 = vmatpush1.msra.mxu0 0.0
        %1793 = vmatprep.subr.mxu0 0.0
        %1794 = vmatpush1.msra.mxu0 0.0
        %1795 = vmatprep.subr.mxu0 0.0
        %1796 = vmatpush1.msra.mxu0 0.0
        %1797 = vmatprep.subr.mxu0 0.0
        %1798 = vmatpush1.msra.mxu0 0.0
        %1799 = vmatprep.subr.mxu0 0.0
        %1800 = vmatpush1.msra.mxu0 0.0
        %1801 = vmatprep.subr.mxu0 0.0
        %1802 = vmatpush1.msra.mxu0 0.0
        %1803 = vmatprep.subr.mxu0 0.0
        %1804 = vmatpush1.msra.mxu0 0.0
        %1805 = vmatprep.subr.mxu0 0.0
        %1806 = vmatpush1.msra.mxu0 0.0
        %1807 = vmatprep.subr.mxu0 0.0
        %1808 = vmatpush1.msra.mxu0 0.0
        %1809 = vmatprep.subr.mxu0 0.0
        %1810 = vmatpush1.msra.mxu0 0.0
        %1811 = vmatprep.subr.mxu0 0.0
        %1812 = vmatpush1.msra.mxu0 0.0
        %1813 = vmatprep.subr.mxu0 0.0
        %1814 = vmatpush1.msra.mxu0 0.0
        %1815 = vmatprep.subr.mxu0 0.0
        %1816 = vmatpush1.msra.mxu0 0.0
        %1817 = vmatprep.subr.mxu0 0.0
        %1818 = vmatpush1.msra.mxu0 0.0
        %1819 = vmatprep.subr.mxu0 0.0
        %1820 = vmatpush1.msra.mxu0 0.0
        %1821 = vmatprep.mubr.f32.mxu0 0.0
        %1822 = vmatmul.mubr.f32.gmra.mrb[0].mxu0 %v1734
        %v1823 = vpop.f32.mrb[0].mxu0
        %v1824 = vadd.f32 0.0, %v1823
        %v1825 = vpop.f32.mrb[0].mxu0
        %v1826 = vadd.f32 0.0, %v1825
        %1827 = vmatprep.mubr.f32.mxu0 0.0
        %1828 = vmatmul.mubr.f32.gmra.mrb[0].mxu0 %v1737
        %v1829 = vpop.f32.mrb[0].mxu0
        %v1830 = vadd.f32 0.0, %v1829
        %v1831 = vpop.f32.mrb[0].mxu0
        %v1832 = vadd.f32 0.0, %v1831
        %1833 = vmatprep.mubr.f32.mxu0 0.0
        %1834 = vmatmul.mubr.f32.gmra.mrb[0].mxu0 %v1740
        %v1835 = vpop.f32.mrb[0].mxu0
        %v1836 = vadd.f32 0.0, %v1835
        %v1837 = vpop.f32.mrb[0].mxu0
        %v1838 = vadd.f32 0.0, %v1837
        %1839 = vmatprep.mubr.f32.mxu0 0.0
        %1840 = vmatmul.mubr.f32.gmra.mrb[0].mxu0 %v1743
        %v1841 = vpop.f32.mrb[0].mxu0
        %v1842 = vadd.f32 0.0, %v1841
        %v1843 = vpop.f32.mrb[0].mxu0
        %v1844 = vadd.f32 0.0, %v1843
        %1845 = vmatprep.mubr.f32.mxu0 0.0
        %1846 = vmatmul.mubr.f32.gmra.mrb[0].mxu0 %v1746
        %v1847 = vpop.f32.mrb[0].mxu0
        %v1848 = vadd.f32 0.0, %v1847
        %v1849 = vpop.f32.mrb[0].mxu0
        %v1850 = vadd.f32 0.0, %v1849
        %1851 = vmatprep.mubr.f32.mxu0 0.0
        %1852 = vmatmul.mubr.f32.gmra.mrb[0].mxu0 %v1749
        %v1853 = vpop.f32.mrb[0].mxu0
        %v1854 = vadd.f32 0.0, %v1853
        %v1855 = vpop.f32.mrb[0].mxu0
        %v1856 = vadd.f32 0.0, %v1855
        %1857 = vmatprep.mubr.f32.mxu0 0.0
        %1858 = vmatmul.mubr.f32.gmra.mrb[0].mxu0 %v1752
        %v1859 = vpop.f32.mrb[0].mxu0
        %v1860 = vadd.f32 0.0, %v1859
        %v1861 = vpop.f32.mrb[0].mxu0
        %v1862 = vadd.f32 0.0, %v1861
        %1863 = vmatprep.mubr.f32.mxu0 0.0
        %1864 = vmatmul.mubr.f32.gmra.mrb[0].mxu0 %v1755
        %v1865 = vpop.f32.mrb[0].mxu0
        %v1866 = vadd.f32 0.0, %v1865
        %v1867 = vpop.f32.mrb[0].mxu0
        %v1868 = vadd.f32 0.0, %v1867
        %1869 = vdwg.mxu0
        %v1871 = vsel %vm235, %v1564, 0
        %v1874 = vsel %vm235, %v1565, 0
        %v1877 = vsel %vm235, %v1566, 0
        %v1880 = vsel %vm235, %v1567, 0
        %v1883 = vsel %vm235, %v1568, 0
        %v1886 = vsel %vm235, %v1569, 0
        %v1889 = vsel %vm235, %v1570, 0
        %v1892 = vsel %vm235, %v1571, 0
        %1894 = vmatprep.subr.mxu0 %v1544
        %1895 = vmatpush1.msra.mxu0 %v1542
        %1896 = vmatprep.subr.mxu0 %v1550
        %1897 = vmatpush1.msra.mxu0 %v1548
        %1898 = vmatprep.subr.mxu0 %v1556
        %1899 = vmatpush1.msra.mxu0 %v1554
        %1900 = vmatprep.subr.mxu0 %v1562
        %1901 = vmatpush1.msra.mxu0 %v1560
        %1902 = vmatprep.subr.mxu0 0.0
        %1903 = vmatpush1.msra.mxu0 0.0
        %1904 = vmatprep.subr.mxu0 0.0
        %1905 = vmatpush1.msra.mxu0 0.0
        %1906 = vmatprep.subr.mxu0 0.0
        %1907 = vmatpush1.msra.mxu0 0.0
        %1908 = vmatprep.subr.mxu0 0.0
        %1909 = vmatpush1.msra.mxu0 0.0
        %1910 = vmatprep.subr.mxu0 0.0
        %1911 = vmatpush1.msra.mxu0 0.0
        %1912 = vmatprep.subr.mxu0 0.0
        %1913 = vmatpush1.msra.mxu0 0.0
        %1914 = vmatprep.subr.mxu0 0.0
        %1915 = vmatpush1.msra.mxu0 0.0
        %1916 = vmatprep.subr.mxu0 0.0
        %1917 = vmatpush1.msra.mxu0 0.0
        %1918 = vmatprep.subr.mxu0 0.0
        %1919 = vmatpush1.msra.mxu0 0.0
        %1920 = vmatprep.subr.mxu0 0.0
        %1921 = vmatpush1.msra.mxu0 0.0
        %1922 = vmatprep.subr.mxu0 0.0
        %1923 = vmatpush1.msra.mxu0 0.0
        %1924 = vmatprep.subr.mxu0 0.0
        %1925 = vmatpush1.msra.mxu0 0.0
        %1926 = vmatprep.subr.mxu0 0.0
        %1927 = vmatpush1.msra.mxu0 0.0
        %1928 = vmatprep.subr.mxu0 0.0
        %1929 = vmatpush1.msra.mxu0 0.0
        %1930 = vmatprep.subr.mxu0 0.0
        %1931 = vmatpush1.msra.mxu0 0.0
        %1932 = vmatprep.subr.mxu0 0.0
        %1933 = vmatpush1.msra.mxu0 0.0
        %1934 = vmatprep.subr.mxu0 0.0
        %1935 = vmatpush1.msra.mxu0 0.0
        %1936 = vmatprep.subr.mxu0 0.0
        %1937 = vmatpush1.msra.mxu0 0.0
        %1938 = vmatprep.subr.mxu0 0.0
        %1939 = vmatpush1.msra.mxu0 0.0
        %1940 = vmatprep.subr.mxu0 0.0
        %1941 = vmatpush1.msra.mxu0 0.0
        %1942 = vmatprep.subr.mxu0 0.0
        %1943 = vmatpush1.msra.mxu0 0.0
        %1944 = vmatprep.subr.mxu0 0.0
        %1945 = vmatpush1.msra.mxu0 0.0
        %1946 = vmatprep.subr.mxu0 0.0
        %1947 = vmatpush1.msra.mxu0 0.0
        %1948 = vmatprep.subr.mxu0 0.0
        %1949 = vmatpush1.msra.mxu0 0.0
        %1950 = vmatprep.subr.mxu0 0.0
        %1951 = vmatpush1.msra.mxu0 0.0
        %1952 = vmatprep.subr.mxu0 0.0
        %1953 = vmatpush1.msra.mxu0 0.0
        %1954 = vmatprep.subr.mxu0 0.0
        %1955 = vmatpush1.msra.mxu0 0.0
        %1956 = vmatprep.subr.mxu0 0.0
        %1957 = vmatpush1.msra.mxu0 0.0
        %1958 = vmatprep.mubr.f32.mxu0 0.0
        %1959 = vmatmul.mubr.f32.gmra.mrb[0].mxu0 %v1871
        %v1960 = vpop.f32.mrb[0].mxu0
        %v1961 = vadd.f32 %v1824, %v1960
        %v1962 = vpop.f32.mrb[0].mxu0
        %v1963 = vadd.f32 %v1826, %v1962
        %1964 = vmatprep.mubr.f32.mxu0 0.0
        %1965 = vmatmul.mubr.f32.gmra.mrb[0].mxu0 %v1874
        %v1966 = vpop.f32.mrb[0].mxu0
        %v1967 = vadd.f32 %v1830, %v1966
        %v1968 = vpop.f32.mrb[0].mxu0
        %v1969 = vadd.f32 %v1832, %v1968
        %1970 = vmatprep.mubr.f32.mxu0 0.0
        %1971 = vmatmul.mubr.f32.gmra.mrb[0].mxu0 %v1877
        %v1972 = vpop.f32.mrb[0].mxu0
        %v1973 = vadd.f32 %v1836, %v1972
        %v1974 = vpop.f32.mrb[0].mxu0
        %v1975 = vadd.f32 %v1838, %v1974
        %1976 = vmatprep.mubr.f32.mxu0 0.0
        %1977 = vmatmul.mubr.f32.gmra.mrb[0].mxu0 %v1880
        %v1978 = vpop.f32.mrb[0].mxu0
        %v1979 = vadd.f32 %v1842, %v1978
        %v1980 = vpop.f32.mrb[0].mxu0
        %v1981 = vadd.f32 %v1844, %v1980
        %1982 = vmatprep.mubr.f32.mxu0 0.0
        %1983 = vmatmul.mubr.f32.gmra.mrb[0].mxu0 %v1883
        %v1984 = vpop.f32.mrb[0].mxu0
        %v1985 = vadd.f32 %v1848, %v1984
        %v1986 = vpop.f32.mrb[0].mxu0
        %v1987 = vadd.f32 %v1850, %v1986
        %1988 = vmatprep.mubr.f32.mxu0 0.0
        %1989 = vmatmul.mubr.f32.gmra.mrb[0].mxu0 %v1886
        %v1990 = vpop.f32.mrb[0].mxu0
        %v1991 = vadd.f32 %v1854, %v1990
        %v1992 = vpop.f32.mrb[0].mxu0
        %v1993 = vadd.f32 %v1856, %v1992
        %1994 = vmatprep.mubr.f32.mxu0 0.0
        %1995 = vmatmul.mubr.f32.gmra.mrb[0].mxu0 %v1889
        %v1996 = vpop.f32.mrb[0].mxu0
        %v1997 = vadd.f32 %v1860, %v1996
        %v1998 = vpop.f32.mrb[0].mxu0
        %v1999 = vadd.f32 %v1862, %v1998
        %2000 = vmatprep.mubr.f32.mxu0 0.0
        %2001 = vmatmul.mubr.f32.gmra.mrb[0].mxu0 %v1892
        %v2002 = vpop.f32.mrb[0].mxu0
        %v2003 = vadd.f32 %v1866, %v2002
        %v2004 = vpop.f32.mrb[0].mxu0
        %v2005 = vadd.f32 %v1868, %v2004
        %2006 = vdwg.mxu0
        %v2007 = vld [vmem:[#allocation2 + $0x7c0] sm:$0xff]
        %v2008 = vld [vmem:[#allocation2 + $0x7c8] sm:$0xff]
        %v2009 = vld [vmem:[#allocation2 + $0x7d0] sm:$0xff]
        %v2010 = vld [vmem:[#allocation2 + $0x7d8] sm:$0xff]
        %v2011 = vld [vmem:[#allocation2 + $0x7e0] sm:$0xff]
        %v2012 = vld [vmem:[#allocation2 + $0x7e8] sm:$0xff]
        %v2013 = vld [vmem:[#allocation2 + $0x7f0] sm:$0xff]
        %v2014 = vld [vmem:[#allocation2 + $0x7f8] sm:$0xff]
        %v2015 = vld [vmem:[#allocation2 + $0x800] sm:$0xff]
        %v2016 = vld [vmem:[#allocation2 + $0x808] sm:$0xff]
        %v2017 = vld [vmem:[#allocation2 + $0x810] sm:$0xff]
        %v2018 = vld [vmem:[#allocation2 + $0x818] sm:$0xff]
        %v2019 = vld [vmem:[#allocation2 + $0x820] sm:$0xff]
        %v2020 = vld [vmem:[#allocation2 + $0x828] sm:$0xff]
        %v2021 = vld [vmem:[#allocation2 + $0x830] sm:$0xff]
        %v2022 = vld [vmem:[#allocation2 + $0x838] sm:$0xff]
        %v2023 = vld [vmem:[#allocation2 + $0x840] sm:$0xff]
        %v2024 = vld [vmem:[#allocation2 + $0x848] sm:$0xff]
        %v2025 = vld [vmem:[#allocation2 + $0x850] sm:$0xff]
        %v2026 = vld [vmem:[#allocation2 + $0x858] sm:$0xff]
        %v2027 = vld [vmem:[#allocation2 + $0x860] sm:$0xff]
        %v2028 = vld [vmem:[#allocation2 + $0x868] sm:$0xff]
        %v2029 = vld [vmem:[#allocation2 + $0x870] sm:$0xff]
        %v2030 = vld [vmem:[#allocation2 + $0x878] sm:$0xff]
        %v2031 = vld [vmem:[#allocation2 + $0x880] sm:$0xff]
        %v2032 = vld [vmem:[#allocation2 + $0x888] sm:$0xff]
        %v2033 = vld [vmem:[#allocation2 + $0x890] sm:$0xff]
        %v2034 = vld [vmem:[#allocation2 + $0x898] sm:$0xff]
        %v2035 = vld [vmem:[#allocation2 + $0x8a0] sm:$0xff]
        %v2036 = vld [vmem:[#allocation2 + $0x8a8] sm:$0xff]
        %v2037 = vld [vmem:[#allocation2 + $0x8b0] sm:$0xff]
        %v2038 = vld [vmem:[#allocation2 + $0x8b8] sm:$0xff]
        %v2039 = vld [vmem:[#allocation2 + $0x8c0] sm:$0xff]
        %v2040 = vld [vmem:[#allocation2 + $0x8c8] sm:$0xff]
        %v2041 = vld [vmem:[#allocation2 + $0x8d0] sm:$0xff]
        %v2042 = vld [vmem:[#allocation2 + $0x8d8] sm:$0xff]
        %v2043 = vld [vmem:[#allocation2 + $0x8e0] sm:$0xff]
        %v2044 = vld [vmem:[#allocation2 + $0x8e8] sm:$0xff]
        %v2045 = vld [vmem:[#allocation2 + $0x8f0] sm:$0xff]
        %v2046 = vld [vmem:[#allocation2 + $0x8f8] sm:$0xff]
        %v2047 = vld [vmem:[#allocation2 + $0x900] sm:$0xff]
        %v2048 = vld [vmem:[#allocation2 + $0x908] sm:$0xff]
        %v2049 = vld [vmem:[#allocation2 + $0x910] sm:$0xff]
        %v2050 = vld [vmem:[#allocation2 + $0x918] sm:$0xff]
        %v2051 = vld [vmem:[#allocation2 + $0x920] sm:$0xff]
        %v2052 = vld [vmem:[#allocation2 + $0x928] sm:$0xff]
        %v2053 = vld [vmem:[#allocation2 + $0x930] sm:$0xff]
        %v2054 = vld [vmem:[#allocation2 + $0x938] sm:$0xff]
        %v2055 = vld [vmem:[#allocation2 + $0x940] sm:$0xff]
        %v2056 = vld [vmem:[#allocation2 + $0x948] sm:$0xff]
        %v2057 = vld [vmem:[#allocation2 + $0x950] sm:$0xff]
        %v2058 = vld [vmem:[#allocation2 + $0x958] sm:$0xff]
        %v2059 = vld [vmem:[#allocation2 + $0x960] sm:$0xff]
        %v2060 = vld [vmem:[#allocation2 + $0x968] sm:$0xff]
        %v2061 = vld [vmem:[#allocation2 + $0x970] sm:$0xff]
        %v2062 = vld [vmem:[#allocation2 + $0x978] sm:$0xff]
        %v2063 = vld [vmem:[#allocation2 + $0x980] sm:$0xff]
        %v2064 = vld [vmem:[#allocation2 + $0x988] sm:$0xff]
        %v2065 = vld [vmem:[#allocation2 + $0x990] sm:$0xff]
        %v2066 = vld [vmem:[#allocation2 + $0x998] sm:$0xff]
        %v2067 = vld [vmem:[#allocation2 + $0x9a0] sm:$0xff]
        %v2068 = vld [vmem:[#allocation2 + $0x9a8] sm:$0xff]
        %v2069 = vld [vmem:[#allocation2 + $0x9b0] sm:$0xff]
        %v2070 = vld [vmem:[#allocation2 + $0x9b8] sm:$0xff]
        %2071 = vmatprep.subr.mxu0 %v2008
        %2072 = vmatpush1.msra.mxu0 %v2007
        %2073 = vmatprep.subr.mxu0 %v2010
        %2074 = vmatpush1.msra.mxu0 %v2009
        %2075 = vmatprep.subr.mxu0 %v2012
        %2076 = vmatpush1.msra.mxu0 %v2011
        %2077 = vmatprep.subr.mxu0 %v2014
        %2078 = vmatpush1.msra.mxu0 %v2013
        %2079 = vmatprep.subr.mxu0 %v2016
        %2080 = vmatpush1.msra.mxu0 %v2015
        %2081 = vmatprep.subr.mxu0 %v2018
        %2082 = vmatpush1.msra.mxu0 %v2017
        %2083 = vmatprep.subr.mxu0 %v2020
        %2084 = vmatpush1.msra.mxu0 %v2019
        %2085 = vmatprep.subr.mxu0 %v2022
        %2086 = vmatpush1.msra.mxu0 %v2021
        %2087 = vmatprep.subr.mxu0 %v2024
        %2088 = vmatpush1.msra.mxu0 %v2023
        %2089 = vmatprep.subr.mxu0 %v2026
        %2090 = vmatpush1.msra.mxu0 %v2025
        %2091 = vmatprep.subr.mxu0 %v2028
        %2092 = vmatpush1.msra.mxu0 %v2027
        %2093 = vmatprep.subr.mxu0 %v2030
        %2094 = vmatpush1.msra.mxu0 %v2029
        %2095 = vmatprep.subr.mxu0 %v2032
        %2096 = vmatpush1.msra.mxu0 %v2031
        %2097 = vmatprep.subr.mxu0 %v2034
        %2098 = vmatpush1.msra.mxu0 %v2033
        %2099 = vmatprep.subr.mxu0 %v2036
        %2100 = vmatpush1.msra.mxu0 %v2035
        %2101 = vmatprep.subr.mxu0 %v2038
        %2102 = vmatpush1.msra.mxu0 %v2037
        %2103 = vmatprep.subr.mxu0 %v2040
        %2104 = vmatpush1.msra.mxu0 %v2039
        %2105 = vmatprep.subr.mxu0 %v2042
        %2106 = vmatpush1.msra.mxu0 %v2041
        %2107 = vmatprep.subr.mxu0 %v2044
        %2108 = vmatpush1.msra.mxu0 %v2043
        %2109 = vmatprep.subr.mxu0 %v2046
        %2110 = vmatpush1.msra.mxu0 %v2045
        %2111 = vmatprep.subr.mxu0 %v2048
        %2112 = vmatpush1.msra.mxu0 %v2047
        %2113 = vmatprep.subr.mxu0 %v2050
        %2114 = vmatpush1.msra.mxu0 %v2049
        %2115 = vmatprep.subr.mxu0 %v2052
        %2116 = vmatpush1.msra.mxu0 %v2051
        %2117 = vmatprep.subr.mxu0 %v2054
        %2118 = vmatpush1.msra.mxu0 %v2053
        %2119 = vmatprep.subr.mxu0 %v2056
        %2120 = vmatpush1.msra.mxu0 %v2055
        %2121 = vmatprep.subr.mxu0 %v2058
        %2122 = vmatpush1.msra.mxu0 %v2057
        %2123 = vmatprep.subr.mxu0 %v2060
        %2124 = vmatpush1.msra.mxu0 %v2059
        %2125 = vmatprep.subr.mxu0 %v2062
        %2126 = vmatpush1.msra.mxu0 %v2061
        %2127 = vmatprep.subr.mxu0 %v2064
        %2128 = vmatpush1.msra.mxu0 %v2063
        %2129 = vmatprep.subr.mxu0 %v2066
        %2130 = vmatpush1.msra.mxu0 %v2065
        %2131 = vmatprep.subr.mxu0 %v2068
        %2132 = vmatpush1.msra.mxu0 %v2067
        %2133 = vmatprep.subr.mxu0 %v2070
        %2134 = vmatpush1.msra.mxu0 %v2069
        %2135 = vmatprep.mubr.f32.mxu0 %v1404
        %2136 = vmatmul.mubr.f32.gmra.mrb[0].mxu0 %v1403
        %v2137 = vpop.f32.mrb[0].mxu0
        %v2138 = vadd.f32 0.0, %v2137
        %v2139 = vpop.f32.mrb[0].mxu0
        %v2140 = vadd.f32 0.0, %v2139
        %2141 = vmatprep.mubr.f32.mxu0 %v1406
        %2142 = vmatmul.mubr.f32.gmra.mrb[0].mxu0 %v1405
        %v2143 = vpop.f32.mrb[0].mxu0
        %v2144 = vadd.f32 0.0, %v2143
        %v2145 = vpop.f32.mrb[0].mxu0
        %v2146 = vadd.f32 0.0, %v2145
        %2147 = vmatprep.mubr.f32.mxu0 %v1408
        %2148 = vmatmul.mubr.f32.gmra.mrb[0].mxu0 %v1407
        %v2149 = vpop.f32.mrb[0].mxu0
        %v2150 = vadd.f32 0.0, %v2149
        %v2151 = vpop.f32.mrb[0].mxu0
        %v2152 = vadd.f32 0.0, %v2151
        %2153 = vmatprep.mubr.f32.mxu0 %v1410
        %2154 = vmatmul.mubr.f32.gmra.mrb[0].mxu0 %v1409
        %v2155 = vpop.f32.mrb[0].mxu0
        %v2156 = vadd.f32 0.0, %v2155
        %v2157 = vpop.f32.mrb[0].mxu0
        %v2158 = vadd.f32 0.0, %v2157
        %2159 = vdwg.mxu0
        %v2160 = vld [vmem:[%s1 + $0x110] sm:$0xff]
        %v2161 = vld [vmem:[%s1 + $0x118] sm:$0xff]
        %v2162 = vld [vmem:[%s1 + $0x120] sm:$0xff]
        %v2163 = vld [vmem:[%s1 + $0x128] sm:$0xff]
        %v2164 = vld [vmem:[%s1 + $0x130] sm:$0xff]
        %v2165 = vld [vmem:[%s1 + $0x138] sm:$0xff]
        %v2166 = vld [vmem:[%s1 + $0x140] sm:$0xff]
        %v2167 = vld [vmem:[%s1 + $0x148] sm:$0xff]
        %v2169 = vsel %vm235, %v2160, 0
        %v2172 = vsel %vm235, %v2161, 0
        %v2175 = vsel %vm235, %v2162, 0
        %v2178 = vsel %vm235, %v2163, 0
        %v2181 = vsel %vm235, %v2164, 0
        %v2184 = vsel %vm235, %v2165, 0
        %v2187 = vsel %vm235, %v2166, 0
        %v2190 = vsel %vm235, %v2167, 0
        %2192 = vmatprep.subr.mxu0 %v2140
        %2193 = vmatpush1.msra.mxu0 %v2138
        %2194 = vmatprep.subr.mxu0 %v2146
        %2195 = vmatpush1.msra.mxu0 %v2144
        %2196 = vmatprep.subr.mxu0 %v2152
        %2197 = vmatpush1.msra.mxu0 %v2150
        %2198 = vmatprep.subr.mxu0 %v2158
        %2199 = vmatpush1.msra.mxu0 %v2156
        %2200 = vmatprep.subr.mxu0 0.0
        %2201 = vmatpush1.msra.mxu0 0.0
        %2202 = vmatprep.subr.mxu0 0.0
        %2203 = vmatpush1.msra.mxu0 0.0
        %2204 = vmatprep.subr.mxu0 0.0
        %2205 = vmatpush1.msra.mxu0 0.0
        %2206 = vmatprep.subr.mxu0 0.0
        %2207 = vmatpush1.msra.mxu0 0.0
        %2208 = vmatprep.subr.mxu0 0.0
        %2209 = vmatpush1.msra.mxu0 0.0
        %2210 = vmatprep.subr.mxu0 0.0
        %2211 = vmatpush1.msra.mxu0 0.0
        %2212 = vmatprep.subr.mxu0 0.0
        %2213 = vmatpush1.msra.mxu0 0.0
        %2214 = vmatprep.subr.mxu0 0.0
        %2215 = vmatpush1.msra.mxu0 0.0
        %2216 = vmatprep.subr.mxu0 0.0
        %2217 = vmatpush1.msra.mxu0 0.0
        %2218 = vmatprep.subr.mxu0 0.0
        %2219 = vmatpush1.msra.mxu0 0.0
        %2220 = vmatprep.subr.mxu0 0.0
        %2221 = vmatpush1.msra.mxu0 0.0
        %2222 = vmatprep.subr.mxu0 0.0
        %2223 = vmatpush1.msra.mxu0 0.0
        %2224 = vmatprep.subr.mxu0 0.0
        %2225 = vmatpush1.msra.mxu0 0.0
        %2226 = vmatprep.subr.mxu0 0.0
        %2227 = vmatpush1.msra.mxu0 0.0
        %2228 = vmatprep.subr.mxu0 0.0
        %2229 = vmatpush1.msra.mxu0 0.0
        %2230 = vmatprep.subr.mxu0 0.0
        %2231 = vmatpush1.msra.mxu0 0.0
        %2232 = vmatprep.subr.mxu0 0.0
        %2233 = vmatpush1.msra.mxu0 0.0
        %2234 = vmatprep.subr.mxu0 0.0
        %2235 = vmatpush1.msra.mxu0 0.0
        %2236 = vmatprep.subr.mxu0 0.0
        %2237 = vmatpush1.msra.mxu0 0.0
        %2238 = vmatprep.subr.mxu0 0.0
        %2239 = vmatpush1.msra.mxu0 0.0
        %2240 = vmatprep.subr.mxu0 0.0
        %2241 = vmatpush1.msra.mxu0 0.0
        %2242 = vmatprep.subr.mxu0 0.0
        %2243 = vmatpush1.msra.mxu0 0.0
        %2244 = vmatprep.subr.mxu0 0.0
        %2245 = vmatpush1.msra.mxu0 0.0
        %2246 = vmatprep.subr.mxu0 0.0
        %2247 = vmatpush1.msra.mxu0 0.0
        %2248 = vmatprep.subr.mxu0 0.0
        %2249 = vmatpush1.msra.mxu0 0.0
        %2250 = vmatprep.subr.mxu0 0.0
        %2251 = vmatpush1.msra.mxu0 0.0
        %2252 = vmatprep.subr.mxu0 0.0
        %2253 = vmatpush1.msra.mxu0 0.0
        %2254 = vmatprep.subr.mxu0 0.0
        %2255 = vmatpush1.msra.mxu0 0.0
        %2256 = vmatprep.mubr.f32.mxu0 0.0
        %2257 = vmatmul.mubr.f32.gmra.mrb[0].mxu0 %v2169
        %v2258 = vpop.f32.mrb[0].mxu0
        %v2259 = vadd.f32 0.0, %v2258
        %v2260 = vpop.f32.mrb[0].mxu0
        %v2261 = vadd.f32 0.0, %v2260
        %2262 = vmatprep.mubr.f32.mxu0 0.0
        %2263 = vmatmul.mubr.f32.gmra.mrb[0].mxu0 %v2172
        %v2264 = vpop.f32.mrb[0].mxu0
        %v2265 = vadd.f32 0.0, %v2264
        %v2266 = vpop.f32.mrb[0].mxu0
        %v2267 = vadd.f32 0.0, %v2266
        %2268 = vmatprep.mubr.f32.mxu0 0.0
        %2269 = vmatmul.mubr.f32.gmra.mrb[0].mxu0 %v2175
        %v2270 = vpop.f32.mrb[0].mxu0
        %v2271 = vadd.f32 0.0, %v2270
        %v2272 = vpop.f32.mrb[0].mxu0
        %v2273 = vadd.f32 0.0, %v2272
        %2274 = vmatprep.mubr.f32.mxu0 0.0
        %2275 = vmatmul.mubr.f32.gmra.mrb[0].mxu0 %v2178
        %v2276 = vpop.f32.mrb[0].mxu0
        %v2277 = vadd.f32 0.0, %v2276
        %v2278 = vpop.f32.mrb[0].mxu0
        %v2279 = vadd.f32 0.0, %v2278
        %2280 = vmatprep.mubr.f32.mxu0 0.0
        %2281 = vmatmul.mubr.f32.gmra.mrb[0].mxu0 %v2181
        %v2282 = vpop.f32.mrb[0].mxu0
        %v2283 = vadd.f32 0.0, %v2282
        %v2284 = vpop.f32.mrb[0].mxu0
        %v2285 = vadd.f32 0.0, %v2284
        %2286 = vmatprep.mubr.f32.mxu0 0.0
        %2287 = vmatmul.mubr.f32.gmra.mrb[0].mxu0 %v2184
        %v2288 = vpop.f32.mrb[0].mxu0
        %v2289 = vadd.f32 0.0, %v2288
        %v2290 = vpop.f32.mrb[0].mxu0
        %v2291 = vadd.f32 0.0, %v2290
        %2292 = vmatprep.mubr.f32.mxu0 0.0
        %2293 = vmatmul.mubr.f32.gmra.mrb[0].mxu0 %v2187
        %v2294 = vpop.f32.mrb[0].mxu0
        %v2295 = vadd.f32 0.0, %v2294
        %v2296 = vpop.f32.mrb[0].mxu0
        %v2297 = vadd.f32 0.0, %v2296
        %2298 = vmatprep.mubr.f32.mxu0 0.0
        %2299 = vmatmul.mubr.f32.gmra.mrb[0].mxu0 %v2190
        %v2300 = vpop.f32.mrb[0].mxu0
        %v2301 = vadd.f32 0.0, %v2300
        %v2302 = vpop.f32.mrb[0].mxu0
        %v2303 = vadd.f32 0.0, %v2302
        %2304 = vdwg.mxu0
        %v2305 = vadd.f32 %v1961, %v2259
        %v2306 = vadd.f32 %v1963, %v2261
        %v2307 = vadd.f32 %v1967, %v2265
        %v2308 = vadd.f32 %v1969, %v2267
        %v2309 = vadd.f32 %v1973, %v2271
        %v2310 = vadd.f32 %v1975, %v2273
        %v2311 = vadd.f32 %v1979, %v2277
        %v2312 = vadd.f32 %v1981, %v2279
        %v2313 = vadd.f32 %v1985, %v2283
        %v2314 = vadd.f32 %v1987, %v2285
        %v2315 = vadd.f32 %v1991, %v2289
        %v2316 = vadd.f32 %v1993, %v2291
        %v2317 = vadd.f32 %v1997, %v2295
        %v2318 = vadd.f32 %v1999, %v2297
        %v2319 = vadd.f32 %v2003, %v2301
        %v2320 = vadd.f32 %v2005, %v2303
        %s2321 = scalar_lea.vmem [#allocation4], 32
        %v2322 = vld [vmem:[%s2321] ss:$8 sm:$0x3]
        %v2324 = vlaneseq
        %v2325 = vshrl.u32 %v2324, 7
        %v2326 = vsub.s32 0, %v2325
        %v2327 = vrot.slane %v2322, %v2326
        %v2328 = vlaneseq
        %v2329 = vshrl.u32 %v2328, 7
        %v2330 = vsub.s32 1, %v2329
        %v2331 = vrot.slane %v2322, %v2330
        %v2334 = vadd.f32 %v2305, %v2327
        %v2335 = vadd.f32 %v2306, %v2331
        %v2336 = vadd.f32 %v2307, %v2327
        %v2337 = vadd.f32 %v2308, %v2331
        %v2338 = vadd.f32 %v2309, %v2327
        %v2339 = vadd.f32 %v2310, %v2331
        %v2340 = vadd.f32 %v2311, %v2327
        %v2341 = vadd.f32 %v2312, %v2331
        %v2342 = vadd.f32 %v2313, %v2327
        %v2343 = vadd.f32 %v2314, %v2331
        %v2344 = vadd.f32 %v2315, %v2327
        %v2345 = vadd.f32 %v2316, %v2331
        %v2346 = vadd.f32 %v2317, %v2327
        %v2347 = vadd.f32 %v2318, %v2331
        %v2348 = vadd.f32 %v2319, %v2327
        %v2349 = vadd.f32 %v2320, %v2331
        %v2350 = vtanh.pop %v2334
        %v2351 = vtanh.pop %v2335
        %v2352 = vtanh.pop %v2336
        %v2353 = vtanh.pop %v2337
        %v2354 = vtanh.pop %v2338
        %v2355 = vtanh.pop %v2339
        %v2356 = vtanh.pop %v2340
        %v2357 = vtanh.pop %v2341
        %v2358 = vtanh.pop %v2342
        %v2359 = vtanh.pop %v2343
        %v2360 = vtanh.pop %v2344
        %v2361 = vtanh.pop %v2345
        %v2362 = vtanh.pop %v2346
        %v2363 = vtanh.pop %v2347
        %v2364 = vtanh.pop %v2348
        %v2365 = vtanh.pop %v2349
        %2366 = vst [vmem:[%s224] sm:$0xff] %v2350
        %2367 = vst [vmem:[%s224 + $0x8] sm:$0xff] %v2351
        %2368 = vst [vmem:[%s224 + $0x10] sm:$0xff] %v2352
        %2369 = vst [vmem:[%s224 + $0x18] sm:$0xff] %v2353
        %2370 = vst [vmem:[%s224 + $0x20] sm:$0xff] %v2354
        %2371 = vst [vmem:[%s224 + $0x28] sm:$0xff] %v2355
        %2372 = vst [vmem:[%s224 + $0x30] sm:$0xff] %v2356
        %2373 = vst [vmem:[%s224 + $0x38] sm:$0xff] %v2357
        %2374 = vst [vmem:[%s224 + $0x40] sm:$0xff] %v2358
        %2375 = vst [vmem:[%s224 + $0x48] sm:$0xff] %v2359
        %2376 = vst [vmem:[%s224 + $0x50] sm:$0xff] %v2360
        %2377 = vst [vmem:[%s224 + $0x58] sm:$0xff] %v2361
        %2378 = vst [vmem:[%s224 + $0x60] sm:$0xff] %v2362
        %2379 = vst [vmem:[%s224 + $0x68] sm:$0xff] %v2363
        %2380 = vst [vmem:[%s224 + $0x70] sm:$0xff] %v2364
        %2381 = vst [vmem:[%s224 + $0x78] sm:$0xff] %v2365
        %p2382 = scmp.lt.s32.totalorder %s17, 1
        %s2383 = scalar_select %p2382, %s17, 1
        %s2384 = smul.addr %s2383, 16
        %s2385 = smul.addr %s2384, 8
        %s2386 = scalar_lea.vmem %s4, %s2385
        // Predicated region
        $region45: #{forward.1} parent=35 // pred_check
          %p2387 = pneg %p124
        $region46: #{forward.1} parent=35 // pred_check_branch
          %2389 = sbr.rel (%p2387) target = $region48
        $region47: #{forward.1} parent=35 // pred_region
          _
        $region48: #{forward.1} parent=35 // pred_fallthru
          _
      $region36: #{forward.1} parent=5 // pred_fallthru
        _
      %p2390 = scmp.le.s32.totalorder 2, %s12
      // Predicated region
      $region49: #{forward.1} parent=5 // pred_check
        %p2391 = pneg %p2390
      $region50: #{forward.1} parent=5 // pred_check_branch
        %2393 = sbr.rel (%p2391) target = $region52
      $region51: #{forward.1} parent=5 // pred_region
        %s2394 = ssub.s32 %s12, 2
        // Predicated region
        $region53: #{forward.1} parent=51 // pred_check
          %p2395 = pneg %p130
        $region54: #{forward.1} parent=51 // pred_check_branch
          %2397 = sbr.rel (%p2395) target = $region56
        $region55: #{forward.1} parent=51 // pred_region
          %p2398 = scmp.lt.s32.totalorder %s18, 1
          %s2399 = scalar_select %p2398, %s18, 1
          %s2400 = smul.addr %s2399, 16
          %s2401 = smul.addr %s2400, 8
          %s2402 = scalar_lea.vmem %s4, %s2401
        $region56: #{forward.1} parent=51 // pred_fallthru
          _
      $region52: #{forward.1} parent=5 // pred_fallthru
        _
    $region6: #{forward.1} parent=1 // loop_footer
      %s16 = sadd.s32 1, %s12
    $region7: #{forward.1} parent=1 // loop_footer_branch
      %11 = sbr.rel target = $region3
    $region8: #{forward.1} parent=1 // loop_exit
      _
    %2403 = vsyncpa [#allocation3], 1
    %s2404 = scalar_lea.sflag [#allocation3], 1
    %2405 = vsyncpa %s2404, 1
    %2406 = vsyncpa [#allocation5], 1

</llo_original>
